<compile_context>
chip_gen: v6e
topology: v6e:2x2x1
jax: 0.10.0
libtpu: 0.0.40
codegen_flags: <defaults>
</compile_context>

<pallas_src>
import jax
import jax.numpy as jnp
import numpy as np
from jax.experimental import pallas as pl
from jax.experimental.pallas import tpu as pltpu

LEAKY_RATE = 0.1


def _vmem_limit_bytes():
    cap = 128 * 1024 * 1024
    try:
        cap = int(pltpu.get_tpu_info().vmem_capacity_bytes)
    except Exception:
        pass
    # half the physical VMEM, capped at 64 MiB: 32 MiB on v7x, 64 MiB on v5e/v6e
    return int(min(cap // 2, 64 * 1024 * 1024))


# --------------------------------------------------------------------------- #
# Kernel 1: fused pairwise squared distances + running top-K (kNN indices).
#           grid = (B, N/ti, N/tj), j innermost with a [ti, K] carry.
# --------------------------------------------------------------------------- #
def _knn_kernel(x_ref, xt_ref, rn_ref, cn_ref, idx_ref, vals_sc, inds_sc):
    j = pl.program_id(2)

    @pl.when(j == 0)
    def _():
        vals_sc[...] = jnp.full(vals_sc.shape, jnp.inf, dtype=vals_sc.dtype)
        inds_sc[...] = jnp.zeros(inds_sc.shape, dtype=inds_sc.dtype)

    x = x_ref[0]                                  # [ti, 3]  f32 rows of this tile
    xt = xt_ref[0]                                # [3, tj]  f32 cols of this tile
    # f32 distances (never leave VMEM) -> no bf16 ranking error near ties
    d = rn_ref[0] + cn_ref[0] - 2.0 * jnp.dot(
        x, xt, preferred_element_type=jnp.float32)          # [ti, tj]
    ti, tj = d.shape
    K = vals_sc.shape[-1]

    col = (j * tj + jax.lax.broadcasted_iota(jnp.int32, (ti, tj), 1)
           ).astype(jnp.float32)                              # global column ids
    slot = jax.lax.broadcasted_iota(jnp.int32, (ti, K), 1).astype(jnp.float32)

    pool_v = vals_sc[...]                         # running K smallest distances
    pool_i = inds_sc[...]                         # their global indices (as f32)
    new_v = jnp.zeros_like(pool_v)
    new_i = jnp.zeros_like(pool_i)
    BIG = jnp.float32(3e38)

    # K-way merge of (carry) U (this tile), smallest first.  Ties prefer the
    # carry / lower index, matching lax.top_k tie-breaking.
    for k in range(K):                            # static unroll, K is small
        dmin = jnp.min(d, axis=-1, keepdims=True)
        dcol = jnp.min(jnp.where(d == dmin, col, BIG), axis=-1, keepdims=True)
        cmin = jnp.min(pool_v, axis=-1, keepdims=True)
        cpos = jnp.min(jnp.where(pool_v == cmin, slot, BIG), axis=-1, keepdims=True)
        cidx = jnp.min(jnp.where(slot == cpos, pool_i, BIG), axis=-1, keepdims=True)
        take = dmin < cmin                        # take from the tile?
        sel_v = jnp.where(take, dmin, cmin)
        sel_i = jnp.where(take, dcol, cidx)
        here = slot == jnp.float32(k)
        new_v = jnp.where(here, sel_v, new_v)
        new_i = jnp.where(here, sel_i, new_i)
        d = jnp.where(take & (col == dcol), jnp.inf, d)                  # consume tile item
        pool_v = jnp.where(jnp.logical_not(take) & (slot == cpos),
                           jnp.inf, pool_v)                              # consume carry item

    vals_sc[...] = new_v
    inds_sc[...] = new_i

    @pl.when(j == pl.num_programs(2) - 1)
    def _():
        idx_ref[0] = inds_sc[...].astype(jnp.int32)


def _pick_knn_tiles(N):
    if N <= 512:
        return N, N
    ti = next((t for t in (256, 128, 64, 32, 16, 8) if N % t == 0), N)
    tj = next((t for t in (512, 256, 128) if N % t == 0), N)
    return ti, tj


def knn_indices(xyz_bn3, nsample, tiles=None):
    """xyz_bn3: [B, N, 3] -> [B, N, nsample] int32 indices of the K nearest points."""
    B, N, _ = xyz_bn3.shape
    assert N >= nsample
    ti, tj = tiles if tiles is not None else _pick_knn_tiles(N)
    assert N % ti == 0 and N % tj == 0
    xyz_b3n = jnp.transpose(xyz_bn3, (0, 2, 1))
    # per-point squared norms computed once (not per (i, j) tile)
    rown = jnp.sum(xyz_bn3 * xyz_bn3, axis=-1, keepdims=True)   # [B, N, 1]
    coln = jnp.transpose(rown, (0, 2, 1))                        # [B, 1, N]
    return pl.pallas_call(
        _knn_kernel,
        out_shape=jax.ShapeDtypeStruct((B, N, nsample), jnp.int32),
        grid_spec=pltpu.PrefetchScalarGridSpec(
            num_scalar_prefetch=0,
            grid=(B, N // ti, N // tj),
            in_specs=[
                pl.BlockSpec((1, ti, 3), lambda b, i, j: (b, i, 0)),
                pl.BlockSpec((1, 3, tj), lambda b, i, j: (b, 0, j)),
                pl.BlockSpec((1, ti, 1), lambda b, i, j: (b, i, 0)),
                pl.BlockSpec((1, 1, tj), lambda b, i, j: (b, 0, j)),
            ],
            out_specs=pl.BlockSpec((1, ti, nsample), lambda b, i, j: (b, i, 0)),
            scratch_shapes=[pltpu.VMEM((ti, nsample), jnp.float32),
                            pltpu.VMEM((ti, nsample), jnp.float32)],
        ),
        compiler_params=pltpu.CompilerParams(
            dimension_semantics=("parallel", "parallel", "arbitrary"),
            vmem_limit_bytes=_vmem_limit_bytes()),
    )(xyz_bn3, xyz_b3n, rown, coln)


# --------------------------------------------------------------------------- #
# Kernel 2: fused WeightNet (3 -> 8 -> 8 -> 16, 1x1 convs + ReLU)
#           + neighbor combine + Linear + LeakyReLU(0.1), lane-dense output.
# --------------------------------------------------------------------------- #
def _pointconv_kernel(np_ref, w1t_ref, b1_ref, w2t_ref, b2_ref,
                      wm_ref, b3t_ref, wl_ref, bl_ref, o_ref):
    npts = np_ref[0]                              # [TN, K, C] bf16 (C = 3 + D)
    TN, K, C = npts.shape
    CW = wl_ref.shape[0]                          # in_channel * weightnet
    cw_pad = wm_ref.shape[-1] - CW                # lane offset of the 'ae' half

    a2 = npts.reshape(TN * K, C)                  # bf16
    gx = a2[:, :3]                                # grouped_xyz_norm channels (free slice)

    # --- WeightNet MLP (1x1 convs): 3 -> 8 -> 8, ReLU; bf16 MXU, f32 acc -----
    h = jnp.dot(gx, w1t_ref[...], preferred_element_type=jnp.float32) + b1_ref[...]
    h = jnp.maximum(h, 0.0)
    h = jnp.dot(h.astype(jnp.bfloat16), w2t_ref[...],
                preferred_element_type=jnp.float32) + b2_ref[...]
    h = jnp.maximum(h, 0.0)

    # --- merged last WeightNet layer + feature lane-expansion ----------------
    # One LHS stream [TN*K, H2+C] x block-diagonal weight
    #   [[w3 pre-tiled along C, 0], [0, 0/1 replication matrix]]
    # gives wt (cols 0:CW) and ae (cols cw_pad:cw_pad+CW) in a single MXU pass
    # (single stationary tile on v6e/v7x when C*W <= 128).
    lhs = jnp.concatenate([h, a2.astype(jnp.float32)], axis=-1).astype(jnp.bfloat16)
    merged = jnp.dot(lhs, wm_ref[...], preferred_element_type=jnp.float32)

    wt = jnp.maximum(merged[:, :CW] + b3t_ref[...], 0.0)   # weights replicated per channel
    ae = merged[:, cw_pad:]                                 # features replicated per weight lane

    # --- neighbor combine + Linear + LeakyReLU (f32 elementwise, bf16 MXU) ---
    p = jnp.sum((ae * wt).reshape(TN, K, CW), axis=1)       # [TN, C*W]
    y = jnp.dot(p.astype(jnp.bfloat16), wl_ref[...],
                preferred_element_type=jnp.float32) + bl_ref[...]
    y = jnp.where(y >= 0.0, y, LEAKY_RATE * y)
    # TODO(synk): emit [OUT, TN] directly (transposed matmul) if the y.T
    # transpose ever shows on the critical path; at OUT=32 it is tiny.
    o_ref[0] = y.T.astype(o_ref.dtype)                      # lane-dense [OUT, TN] store


def _pick_tn(N, K, C):
    """N-tile sized from the PADDED (lane=128, bf16, double-buffered) footprint."""
    if N <= 256:
        return N                                  # full dims satisfy layout rules
    lane_pad = 128 * ((C + 127) // 128)
    budget = 8 * 1024 * 1024                      # input-block VMEM budget
    cap = budget // (4 * K * lane_pad)            # 2 buffers * 2 B/elem
    for t in (256, 128):
        if N % t == 0 and t <= max(cap, 128) and t * K <= 4096:
            return t
    return 128 if N % 128 == 0 else N


def pointconv_pallas(new_points, kernel_params, out_channel, tn=None):
    """new_points: [B, N, K, C] (channels 0:3 = grouped_xyz_norm)
       -> [B, out_channel, N] float32."""
    B, N, K, C = new_points.shape
    if tn is None:
        tn = _pick_tn(N, K, C)
    assert N % tn == 0
    w1t, b1, w2t, b2, wm, b3t, wl_flat, bl = kernel_params
    newp_bf = new_points.astype(jnp.bfloat16)     # halve DMA + padded VMEM

    def _param_spec(arr):
        nd = arr.ndim
        return pl.BlockSpec(arr.shape, lambda b, n, _nd=nd: (0,) * _nd)

    return pl.pallas_call(
        _pointconv_kernel,
        out_shape=jax.ShapeDtypeStruct((B, out_channel, N), jnp.float32),
        grid_spec=pltpu.PrefetchScalarGridSpec(
            num_scalar_prefetch=0,
            grid=(B, N // tn),
            in_specs=[
                pl.BlockSpec((1, tn, K, C), lambda b, n: (b, n, 0, 0)),
                _param_spec(w1t), _param_spec(b1),
                _param_spec(w2t), _param_spec(b2),
                _param_spec(wm), _param_spec(b3t),
                _param_spec(wl_flat), _param_spec(bl),
            ],
            out_specs=pl.BlockSpec((1, out_channel, tn), lambda b, n: (b, 0, n)),
        ),
        compiler_params=pltpu.CompilerParams(
            dimension_semantics=("parallel", "parallel"),
            vmem_limit_bytes=_vmem_limit_bytes()),
    )(newp_bf, w1t, b1, w2t, b2, wm, b3t, wl_flat, bl)


# --------------------------------------------------------------------------- #
# Glue: grouping (Pallas kNN + plain-JAX gather) and the full forward pass
# --------------------------------------------------------------------------- #
def prepare_groups(xyz, points, nsample):
    """xyz: [B,3,N], points: [B,D,N] -> new_points [B,N,K,3+D], idx [B,N,K]."""
    xyz_t = jnp.transpose(xyz, (0, 2, 1))         # [B, N, 3]
    pts_t = jnp.transpose(points, (0, 2, 1))      # [B, N, D]
    idx = knn_indices(xyz_t, nsample)             # [B, N, K] int32 (Pallas, fused top-K)
    # data-dependent gather stays in plain JAX
    gather = jax.vmap(lambda p, i: p[i])
    grouped_xyz = gather(xyz_t, idx)              # [B, N, K, 3]
    grouped_pts = gather(pts_t, idx)              # [B, N, K, D]
    grouped_xyz_norm = grouped_xyz - xyz_t[:, :, None, :]
    new_points = jnp.concatenate([grouped_xyz_norm, grouped_pts], axis=-1)
    return new_points, idx


def pointconv_forward(xyz, points, kernel_params, out_channel, nsample):
    new_points, _ = prepare_groups(xyz, points, nsample)
    return pointconv_pallas(new_points, kernel_params, out_channel)


# --------------------------------------------------------------------------- #
# Deterministic parameter init (shapes follow the PyTorch module)
# --------------------------------------------------------------------------- #
def init_params(key, in_channel, out_channel, weightnet=16, hidden=(8, 8)):
    ks = jax.random.split(key, 8)
    s = 0.2
    w1 = s * jax.random.normal(ks[0], (hidden[0], 3), jnp.float32)          # Conv2d(3,8,1)
    b1 = s * jax.random.normal(ks[1], (hidden[0],), jnp.float32)
    w2 = s * jax.random.normal(ks[2], (hidden[1], hidden[0]), jnp.float32)  # Conv2d(8,8,1)
    b2 = s * jax.random.normal(ks[3], (hidden[1],), jnp.float32)
    w3 = s * jax.random.normal(ks[4], (weightnet, hidden[1]), jnp.float32)  # Conv2d(8,16,1)
    b3 = s * jax.random.normal(ks[5], (weightnet,), jnp.float32)
    wl = s * jax.random.normal(ks[6], (out_channel, weightnet * in_channel), jnp.float32)
    bl = s * jax.random.normal(ks[7], (out_channel,), jnp.float32)
    raw = (w1, b1, w2, b2, w3, b3, wl, bl)

    C, W = in_channel, weightnet
    CW = C * W
    cw_pad = 128 * ((CW + 127) // 128)            # lane-aligned offset of the 'ae' half
    # 0/1 replication matrices for the flat index i = c*W + j
    e_mat = jnp.kron(jnp.eye(C, dtype=jnp.float32),
                     jnp.ones((1, W), jnp.float32))           # [C, CW]
    t_mat = jnp.kron(jnp.ones((1, C), jnp.float32),
                     jnp.eye(W, dtype=jnp.float32))           # [W, CW]
    # fold T into the last WeightNet layer (exact: ReLU commutes with 0/1 replication)
    w3t_tiled = jnp.matmul(w3.T, t_mat)                        # [hidden[-1], CW]
    b3_tiled = jnp.matmul(b3[None, :], t_mat)                  # [1, CW]
    # block-diagonal merged weight: rows [hidden[-1] | C], cols [wt | pad | ae]
    wm = jnp.zeros((hidden[1] + C, cw_pad + CW), jnp.float32)
    wm = wm.at[:hidden[1], :CW].set(w3t_tiled)
    wm = wm.at[hidden[1]:, cw_pad:].set(e_mat)
    wl_flat = wl.T                                             # [CW, OUT], rows indexed c*W+j

    bf = jnp.bfloat16
    kern = (w1.T.astype(bf), b1[None, :], w2.T.astype(bf), b2[None, :],
            wm.astype(bf), b3_tiled, wl_flat.astype(bf), bl[None, :])
    return raw, kern


# --------------------------------------------------------------------------- #
# Pure-JAX references (mirror the PyTorch math) for validation
# --------------------------------------------------------------------------- #
def reference_pointconv(newp, raw_params):
    w1, b1, w2, b2, w3, b3, wl, bl = raw_params
    gxn = newp[..., :3]
    h = jax.nn.relu(jnp.einsum('bnkc,hc->bnkh', gxn, w1, precision='highest') + b1)
    h = jax.nn.relu(jnp.einsum('bnkh,gh->bnkg', h, w2, precision='highest') + b2)
    w = jax.nn.relu(jnp.einsum('bnkg,wg->bnkw', h, w3, precision='highest') + b3)
    B, N, K, C = newp.shape
    prod = jnp.einsum('bnkc,bnkw->bncw', newp, w, precision='highest').reshape(B, N, -1)
    y = jnp.einsum('bni,oi->bno', prod, wl, precision='highest') + bl
    y = jnp.where(y >= 0.0, y, LEAKY_RATE * y)
    return jnp.transpose(y, (0, 2, 1))            # [B, out_channel, N]


def reference_sqdist(xyz_bn3):
    s = jnp.sum(xyz_bn3 ** 2, axis=-1)
    d = -2.0 * jnp.einsum('bnc,bmc->bnm', xyz_bn3, xyz_bn3, precision='highest')
    return d + s[:, :, None] + s[:, None, :]


# --------------------------------------------------------------------------- #
if __name__ == "__main__":
    B, N, D = 2, 32, 4          # batch, points, feature channels
    K = 8                       # nsample
    in_channel = 3 + D          # channels entering the combine (xyz_norm + feats)
    weightnet = 16
    out_channel = 32

    key = jax.random.PRNGKey(0)
    k_xyz, k_pts, k_par = jax.random.split(key, 3)
    xyz = jax.random.normal(k_xyz, (B, 3, N), jnp.float32)
    points = jax.random.normal(k_pts, (B, D, N), jnp.float32)

    raw_params, kernel_params = init_params(k_par, in_channel, out_channel, weightnet)

    # full forward: fused kNN kernel + gather glue + fused pointconv kernel
    out = pointconv_forward(xyz, points, kernel_params, out_channel, nsample=K)
    out = jax.block_until_ready(out)
    assert out.shape == (B, out_channel, N)

    # --- validate the fused distance + top-K kernel -------------------------
    xyz_t = jnp.transpose(xyz, (0, 2, 1))
    idx = knn_indices(xyz_t, K)
    ref_d = reference_sqdist(xyz_t)
    ref_vals = jnp.sort(-jax.lax.top_k(-ref_d, K)[0], axis=-1)        # K smallest dists
    ker_vals = jnp.sort(jnp.take_along_axis(ref_d, idx, axis=-1), axis=-1)
    np.testing.assert_allclose(np.asarray(ker_vals), np.asarray(ref_vals),
                               rtol=1e-4, atol=1e-4)

    # --- validate the fused pointconv kernel (same kNN indices both paths) ---
    newp, _ = prepare_groups(xyz, points, K)
    out_kernel = pointconv_pallas(newp, kernel_params, out_channel)
    out_ref = reference_pointconv(newp, raw_params)
    np.testing.assert_allclose(np.asarray(out_kernel), np.asarray(out_ref),
                               rtol=2e-2, atol=2e-2)                   # bf16 MXU operands

    print("KERNEL_OK")
</pallas_src>

<mosaic_0001>
module attributes {stable_mosaic.version = 11 : i64} {
  func.func @_knn_kernel(%arg0: i32, %arg1: i32, %arg2: i32, %arg3: memref<1x32x3xf32, #tpu.memory_space<vmem>>, %arg4: memref<1x3x32xf32, #tpu.memory_space<vmem>>, %arg5: memref<1x32x1xf32, #tpu.memory_space<vmem>>, %arg6: memref<1x1x32xf32, #tpu.memory_space<vmem>>, %arg7: memref<1x32x8xi32, #tpu.memory_space<vmem>>, %arg8: memref<32x8xf32, #tpu.memory_space<vmem>>, %arg9: memref<32x8xf32, #tpu.memory_space<vmem>>) attributes {dimension_semantics = [#tpu.dimension_semantics<parallel>, #tpu.dimension_semantics<parallel>, #tpu.dimension_semantics<arbitrary>], iteration_bounds = array<i64: 2, 1, 1>, scalar_prefetch = 0 : i64, scratch_operands = 2 : i64, tpu.core_type = #tpu.core_type<tc>, window_params = [{transform_indices = @transform_0, window_bounds = array<i64: 1, 32, 3>}, {transform_indices = @transform_1, window_bounds = array<i64: 1, 3, 32>}, {transform_indices = @transform_2, window_bounds = array<i64: 1, 32, 1>}, {transform_indices = @transform_3, window_bounds = array<i64: 1, 1, 32>}, {transform_indices = @transform_4, window_bounds = array<i64: 1, 32, 8>}]} {
    %c0_i32 = arith.constant 0 : i32
    %0 = arith.cmpi eq, %arg2, %c0_i32 : i32
    %1 = arith.extui %0 : i1 to i32
    %c0_i32_0 = arith.constant 0 : i32
    %2 = arith.cmpi ne, %1, %c0_i32_0 : i32
    scf.if %2 {
      %cst_118 = arith.constant 0x7F800000 : f32
      %389 = vector.broadcast %cst_118 : f32 to vector<32x8xf32>
      %c0_119 = arith.constant 0 : index
      %c0_120 = arith.constant 0 : index
      %390 = vector.load %arg8[%c0_119, %c0_120] : memref<32x8xf32, #tpu.memory_space<vmem>>, vector<32x8xf32>
      tpu.vector_store %arg8[%c0_119, %c0_120], %389 {strides = array<i32>} : memref<32x8xf32, #tpu.memory_space<vmem>>, vector<32x8xf32>,
      %cst_121 = arith.constant 0.000000e+00 : f32
      %391 = vector.broadcast %cst_121 : f32 to vector<32x8xf32>
      %c0_122 = arith.constant 0 : index
      %c0_123 = arith.constant 0 : index
      %392 = vector.load %arg9[%c0_122, %c0_123] : memref<32x8xf32, #tpu.memory_space<vmem>>, vector<32x8xf32>
      tpu.vector_store %arg9[%c0_122, %c0_123], %391 {strides = array<i32>} : memref<32x8xf32, #tpu.memory_space<vmem>>, vector<32x8xf32>,
    } else {
    }
    %c0 = arith.constant 0 : index
    %c0_1 = arith.constant 0 : index
    %c0_2 = arith.constant 0 : index
    %3 = vector.load %arg3[%c0, %c0_1, %c0_2] : memref<1x32x3xf32, #tpu.memory_space<vmem>>, vector<1x32x3xf32>
    %4 = vector.shape_cast %3 : vector<1x32x3xf32> to vector<32x3xf32>
    %c0_3 = arith.constant 0 : index
    %c0_4 = arith.constant 0 : index
    %c0_5 = arith.constant 0 : index
    %5 = vector.load %arg4[%c0_3, %c0_4, %c0_5] : memref<1x3x32xf32, #tpu.memory_space<vmem>>, vector<1x3x32xf32>
    %6 = vector.shape_cast %5 : vector<1x3x32xf32> to vector<3x32xf32>
    %c0_6 = arith.constant 0 : index
    %c0_7 = arith.constant 0 : index
    %c0_8 = arith.constant 0 : index
    %7 = vector.load %arg5[%c0_6, %c0_7, %c0_8] : memref<1x32x1xf32, #tpu.memory_space<vmem>>, vector<1x32x1xf32>
    %8 = vector.shape_cast %7 : vector<1x32x1xf32> to vector<32x1xf32>
    %c0_9 = arith.constant 0 : index
    %c0_10 = arith.constant 0 : index
    %c0_11 = arith.constant 0 : index
    %9 = vector.load %arg6[%c0_9, %c0_10, %c0_11] : memref<1x1x32xf32, #tpu.memory_space<vmem>>, vector<1x1x32xf32>
    %10 = vector.shape_cast %9 : vector<1x1x32xf32> to vector<1x32xf32>
    %11 = vector.broadcast %8 : vector<32x1xf32> to vector<32x32xf32>
    %12 = vector.broadcast %10 : vector<1x32xf32> to vector<32x32xf32>
    %13 = arith.addf %11, %12 : vector<32x32xf32>
    %cst = arith.constant dense<0.000000e+00> : vector<32x32xf32>
    %14 = tpu.matmul %4, %6, %cst {dimension_numbers = #tpu.dot_dimension_numbers<[1], [0], [0], [1], [0, 0, 1, 1], [], []>} : vector<32x3xf32>, vector<3x32xf32>, vector<32x32xf32> -> vector<32x32xf32>
    %cst_12 = arith.constant 2.000000e+00 : f32
    %15 = vector.broadcast %cst_12 : f32 to vector<32x32xf32>
    %16 = arith.mulf %15, %14 : vector<32x32xf32>
    %17 = arith.subf %13, %16 : vector<32x32xf32>
    %c32_i32 = arith.constant 32 : i32
    %18 = arith.muli %arg2, %c32_i32 : i32
    %19 = tpu.iota {dimensions = array<i32: 1>} : vector<32x32xi32>
    %20 = vector.broadcast %18 : i32 to vector<32x32xi32>
    %21 = arith.addi %20, %19 : vector<32x32xi32>
    %22 = arith.sitofp %21 : vector<32x32xi32> to vector<32x32xf32>
    %23 = tpu.iota {dimensions = array<i32: 1>} : vector<32x8xi32>
    %24 = arith.sitofp %23 : vector<32x8xi32> to vector<32x8xf32>
    %c0_13 = arith.constant 0 : index
    %c0_14 = arith.constant 0 : index
    %25 = vector.load %arg8[%c0_13, %c0_14] : memref<32x8xf32, #tpu.memory_space<vmem>>, vector<32x8xf32>
    %c0_15 = arith.constant 0 : index
    %c0_16 = arith.constant 0 : index
    %26 = vector.load %arg9[%c0_15, %c0_16] : memref<32x8xf32, #tpu.memory_space<vmem>>, vector<32x8xf32>
    %cst_17 = arith.constant 0.000000e+00 : f32
    %27 = vector.broadcast %cst_17 : f32 to vector<32x8xf32>
    %cst_18 = arith.constant 0.000000e+00 : f32
    %28 = vector.broadcast %cst_18 : f32 to vector<32x8xf32>
    %cst_19 = arith.constant dense<0x7F800000> : vector<32xf32>
    %29 = vector.multi_reduction <minimumf>, %17, %cst_19 [1] : vector<32x32xf32> to vector<32xf32>
    %30 = vector.shape_cast %29 : vector<32xf32> to vector<32x1xf32>
    %31 = vector.broadcast %30 : vector<32x1xf32> to vector<32x32xf32>
    %32 = arith.cmpf oeq, %17, %31 : vector<32x32xf32>
    %cst_20 = arith.constant 3.000000e+38 : f32
    %33 = vector.broadcast %cst_20 : f32 to vector<32x32xf32>
    %34 = arith.select %32, %22, %33 : vector<32x32xi1>, vector<32x32xf32>
    %cst_21 = arith.constant dense<0x7F800000> : vector<32xf32>
    %35 = vector.multi_reduction <minimumf>, %34, %cst_21 [1] : vector<32x32xf32> to vector<32xf32>
    %36 = vector.shape_cast %35 : vector<32xf32> to vector<32x1xf32>
    %cst_22 = arith.constant dense<0x7F800000> : vector<32xf32>
    %37 = vector.multi_reduction <minimumf>, %25, %cst_22 [1] : vector<32x8xf32> to vector<32xf32>
    %38 = vector.shape_cast %37 : vector<32xf32> to vector<32x1xf32>
    %39 = vector.broadcast %38 : vector<32x1xf32> to vector<32x8xf32>
    %40 = arith.cmpf oeq, %25, %39 : vector<32x8xf32>
    %cst_23 = arith.constant 3.000000e+38 : f32
    %41 = vector.broadcast %cst_23 : f32 to vector<32x8xf32>
    %42 = arith.select %40, %24, %41 : vector<32x8xi1>, vector<32x8xf32>
    %cst_24 = arith.constant dense<0x7F800000> : vector<32xf32>
    %43 = vector.multi_reduction <minimumf>, %42, %cst_24 [1] : vector<32x8xf32> to vector<32xf32>
    %44 = vector.shape_cast %43 : vector<32xf32> to vector<32x1xf32>
    %45 = vector.broadcast %44 : vector<32x1xf32> to vector<32x8xf32>
    %46 = arith.cmpf oeq, %24, %45 : vector<32x8xf32>
    %cst_25 = arith.constant 3.000000e+38 : f32
    %47 = vector.broadcast %cst_25 : f32 to vector<32x8xf32>
    %48 = arith.select %46, %26, %47 : vector<32x8xi1>, vector<32x8xf32>
    %cst_26 = arith.constant dense<0x7F800000> : vector<32xf32>
    %49 = vector.multi_reduction <minimumf>, %48, %cst_26 [1] : vector<32x8xf32> to vector<32xf32>
    %50 = vector.shape_cast %49 : vector<32xf32> to vector<32x1xf32>
    %51 = arith.cmpf olt, %30, %38 : vector<32x1xf32>
    %52 = arith.select %51, %30, %38 : vector<32x1xi1>, vector<32x1xf32>
    %53 = arith.select %51, %36, %50 : vector<32x1xi1>, vector<32x1xf32>
    %cst_27 = arith.constant 0.000000e+00 : f32
    %54 = vector.broadcast %cst_27 : f32 to vector<32x8xf32>
    %55 = arith.cmpf oeq, %24, %54 : vector<32x8xf32>
    %56 = vector.shape_cast %52 : vector<32x1xf32> to vector<32x1xf32>
    %57 = vector.broadcast %56 : vector<32x1xf32> to vector<32x8xf32>
    %58 = arith.select %55, %57, %27 : vector<32x8xi1>, vector<32x8xf32>
    %59 = vector.shape_cast %53 : vector<32x1xf32> to vector<32x1xf32>
    %60 = vector.broadcast %59 : vector<32x1xf32> to vector<32x8xf32>
    %61 = arith.select %55, %60, %28 : vector<32x8xi1>, vector<32x8xf32>
    %62 = vector.broadcast %36 : vector<32x1xf32> to vector<32x32xf32>
    %63 = arith.cmpf oeq, %22, %62 : vector<32x32xf32>
    %64 = vector.broadcast %51 : vector<32x1xi1> to vector<32x32xi1>
    %65 = arith.andi %64, %63 : vector<32x32xi1>
    %cst_28 = arith.constant 0x7F800000 : f32
    %66 = vector.broadcast %cst_28 : f32 to vector<32x32xf32>
    %67 = arith.select %65, %66, %17 : vector<32x32xi1>, vector<32x32xf32>
    %cst_29 = arith.constant dense<true> : vector<32x1xi1>
    %68 = arith.xori %51, %cst_29 : vector<32x1xi1>
    %69 = vector.broadcast %44 : vector<32x1xf32> to vector<32x8xf32>
    %70 = arith.cmpf oeq, %24, %69 : vector<32x8xf32>
    %71 = vector.broadcast %68 : vector<32x1xi1> to vector<32x8xi1>
    %72 = arith.andi %71, %70 : vector<32x8xi1>
    %cst_30 = arith.constant 0x7F800000 : f32
    %73 = vector.broadcast %cst_30 : f32 to vector<32x8xf32>
    %74 = arith.select %72, %73, %25 : vector<32x8xi1>, vector<32x8xf32>
    %cst_31 = arith.constant dense<0x7F800000> : vector<32xf32>
    %75 = vector.multi_reduction <minimumf>, %67, %cst_31 [1] : vector<32x32xf32> to vector<32xf32>
    %76 = vector.shape_cast %75 : vector<32xf32> to vector<32x1xf32>
    %77 = vector.broadcast %76 : vector<32x1xf32> to vector<32x32xf32>
    %78 = arith.cmpf oeq, %67, %77 : vector<32x32xf32>
    %cst_32 = arith.constant 3.000000e+38 : f32
    %79 = vector.broadcast %cst_32 : f32 to vector<32x32xf32>
    %80 = arith.select %78, %22, %79 : vector<32x32xi1>, vector<32x32xf32>
    %cst_33 = arith.constant dense<0x7F800000> : vector<32xf32>
    %81 = vector.multi_reduction <minimumf>, %80, %cst_33 [1] : vector<32x32xf32> to vector<32xf32>
    %82 = vector.shape_cast %81 : vector<32xf32> to vector<32x1xf32>
    %cst_34 = arith.constant dense<0x7F800000> : vector<32xf32>
    %83 = vector.multi_reduction <minimumf>, %74, %cst_34 [1] : vector<32x8xf32> to vector<32xf32>
    %84 = vector.shape_cast %83 : vector<32xf32> to vector<32x1xf32>
    %85 = vector.broadcast %84 : vector<32x1xf32> to vector<32x8xf32>
    %86 = arith.cmpf oeq, %74, %85 : vector<32x8xf32>
    %cst_35 = arith.constant 3.000000e+38 : f32
    %87 = vector.broadcast %cst_35 : f32 to vector<32x8xf32>
    %88 = arith.select %86, %24, %87 : vector<32x8xi1>, vector<32x8xf32>
    %cst_36 = arith.constant dense<0x7F800000> : vector<32xf32>
    %89 = vector.multi_reduction <minimumf>, %88, %cst_36 [1] : vector<32x8xf32> to vector<32xf32>
    %90 = vector.shape_cast %89 : vector<32xf32> to vector<32x1xf32>
    %91 = vector.broadcast %90 : vector<32x1xf32> to vector<32x8xf32>
    %92 = arith.cmpf oeq, %24, %91 : vector<32x8xf32>
    %cst_37 = arith.constant 3.000000e+38 : f32
    %93 = vector.broadcast %cst_37 : f32 to vector<32x8xf32>
    %94 = arith.select %92, %26, %93 : vector<32x8xi1>, vector<32x8xf32>
    %cst_38 = arith.constant dense<0x7F800000> : vector<32xf32>
    %95 = vector.multi_reduction <minimumf>, %94, %cst_38 [1] : vector<32x8xf32> to vector<32xf32>
    %96 = vector.shape_cast %95 : vector<32xf32> to vector<32x1xf32>
    %97 = arith.cmpf olt, %76, %84 : vector<32x1xf32>
    %98 = arith.select %97, %76, %84 : vector<32x1xi1>, vector<32x1xf32>
    %99 = arith.select %97, %82, %96 : vector<32x1xi1>, vector<32x1xf32>
    %cst_39 = arith.constant 1.000000e+00 : f32
    %100 = vector.broadcast %cst_39 : f32 to vector<32x8xf32>
    %101 = arith.cmpf oeq, %24, %100 : vector<32x8xf32>
    %102 = vector.shape_cast %98 : vector<32x1xf32> to vector<32x1xf32>
    %103 = vector.broadcast %102 : vector<32x1xf32> to vector<32x8xf32>
    %104 = arith.select %101, %103, %58 : vector<32x8xi1>, vector<32x8xf32>
    %105 = vector.shape_cast %99 : vector<32x1xf32> to vector<32x1xf32>
    %106 = vector.broadcast %105 : vector<32x1xf32> to vector<32x8xf32>
    %107 = arith.select %101, %106, %61 : vector<32x8xi1>, vector<32x8xf32>
    %108 = vector.broadcast %82 : vector<32x1xf32> to vector<32x32xf32>
    %109 = arith.cmpf oeq, %22, %108 : vector<32x32xf32>
    %110 = vector.broadcast %97 : vector<32x1xi1> to vector<32x32xi1>
    %111 = arith.andi %110, %109 : vector<32x32xi1>
    %cst_40 = arith.constant 0x7F800000 : f32
    %112 = vector.broadcast %cst_40 : f32 to vector<32x32xf32>
    %113 = arith.select %111, %112, %67 : vector<32x32xi1>, vector<32x32xf32>
    %cst_41 = arith.constant dense<true> : vector<32x1xi1>
    %114 = arith.xori %97, %cst_41 : vector<32x1xi1>
    %115 = vector.broadcast %90 : vector<32x1xf32> to vector<32x8xf32>
    %116 = arith.cmpf oeq, %24, %115 : vector<32x8xf32>
    %117 = vector.broadcast %114 : vector<32x1xi1> to vector<32x8xi1>
    %118 = arith.andi %117, %116 : vector<32x8xi1>
    %cst_42 = arith.constant 0x7F800000 : f32
    %119 = vector.broadcast %cst_42 : f32 to vector<32x8xf32>
    %120 = arith.select %118, %119, %74 : vector<32x8xi1>, vector<32x8xf32>
    %cst_43 = arith.constant dense<0x7F800000> : vector<32xf32>
    %121 = vector.multi_reduction <minimumf>, %113, %cst_43 [1] : vector<32x32xf32> to vector<32xf32>
    %122 = vector.shape_cast %121 : vector<32xf32> to vector<32x1xf32>
    %123 = vector.broadcast %122 : vector<32x1xf32> to vector<32x32xf32>
    %124 = arith.cmpf oeq, %113, %123 : vector<32x32xf32>
    %cst_44 = arith.constant 3.000000e+38 : f32
    %125 = vector.broadcast %cst_44 : f32 to vector<32x32xf32>
    %126 = arith.select %124, %22, %125 : vector<32x32xi1>, vector<32x32xf32>
    %cst_45 = arith.constant dense<0x7F800000> : vector<32xf32>
    %127 = vector.multi_reduction <minimumf>, %126, %cst_45 [1] : vector<32x32xf32> to vector<32xf32>
    %128 = vector.shape_cast %127 : vector<32xf32> to vector<32x1xf32>
    %cst_46 = arith.constant dense<0x7F800000> : vector<32xf32>
    %129 = vector.multi_reduction <minimumf>, %120, %cst_46 [1] : vector<32x8xf32> to vector<32xf32>
    %130 = vector.shape_cast %129 : vector<32xf32> to vector<32x1xf32>
    %131 = vector.broadcast %130 : vector<32x1xf32> to vector<32x8xf32>
    %132 = arith.cmpf oeq, %120, %131 : vector<32x8xf32>
    %cst_47 = arith.constant 3.000000e+38 : f32
    %133 = vector.broadcast %cst_47 : f32 to vector<32x8xf32>
    %134 = arith.select %132, %24, %133 : vector<32x8xi1>, vector<32x8xf32>
    %cst_48 = arith.constant dense<0x7F800000> : vector<32xf32>
    %135 = vector.multi_reduction <minimumf>, %134, %cst_48 [1] : vector<32x8xf32> to vector<32xf32>
    %136 = vector.shape_cast %135 : vector<32xf32> to vector<32x1xf32>
    %137 = vector.broadcast %136 : vector<32x1xf32> to vector<32x8xf32>
    %138 = arith.cmpf oeq, %24, %137 : vector<32x8xf32>
    %cst_49 = arith.constant 3.000000e+38 : f32
    %139 = vector.broadcast %cst_49 : f32 to vector<32x8xf32>
    %140 = arith.select %138, %26, %139 : vector<32x8xi1>, vector<32x8xf32>
    %cst_50 = arith.constant dense<0x7F800000> : vector<32xf32>
    %141 = vector.multi_reduction <minimumf>, %140, %cst_50 [1] : vector<32x8xf32> to vector<32xf32>
    %142 = vector.shape_cast %141 : vector<32xf32> to vector<32x1xf32>
    %143 = arith.cmpf olt, %122, %130 : vector<32x1xf32>
    %144 = arith.select %143, %122, %130 : vector<32x1xi1>, vector<32x1xf32>
    %145 = arith.select %143, %128, %142 : vector<32x1xi1>, vector<32x1xf32>
    %cst_51 = arith.constant 2.000000e+00 : f32
    %146 = vector.broadcast %cst_51 : f32 to vector<32x8xf32>
    %147 = arith.cmpf oeq, %24, %146 : vector<32x8xf32>
    %148 = vector.shape_cast %144 : vector<32x1xf32> to vector<32x1xf32>
    %149 = vector.broadcast %148 : vector<32x1xf32> to vector<32x8xf32>
    %150 = arith.select %147, %149, %104 : vector<32x8xi1>, vector<32x8xf32>
    %151 = vector.shape_cast %145 : vector<32x1xf32> to vector<32x1xf32>
    %152 = vector.broadcast %151 : vector<32x1xf32> to vector<32x8xf32>
    %153 = arith.select %147, %152, %107 : vector<32x8xi1>, vector<32x8xf32>
    %154 = vector.broadcast %128 : vector<32x1xf32> to vector<32x32xf32>
    %155 = arith.cmpf oeq, %22, %154 : vector<32x32xf32>
    %156 = vector.broadcast %143 : vector<32x1xi1> to vector<32x32xi1>
    %157 = arith.andi %156, %155 : vector<32x32xi1>
    %cst_52 = arith.constant 0x7F800000 : f32
    %158 = vector.broadcast %cst_52 : f32 to vector<32x32xf32>
    %159 = arith.select %157, %158, %113 : vector<32x32xi1>, vector<32x32xf32>
    %cst_53 = arith.constant dense<true> : vector<32x1xi1>
    %160 = arith.xori %143, %cst_53 : vector<32x1xi1>
    %161 = vector.broadcast %136 : vector<32x1xf32> to vector<32x8xf32>
    %162 = arith.cmpf oeq, %24, %161 : vector<32x8xf32>
    %163 = vector.broadcast %160 : vector<32x1xi1> to vector<32x8xi1>
    %164 = arith.andi %163, %162 : vector<32x8xi1>
    %cst_54 = arith.constant 0x7F800000 : f32
    %165 = vector.broadcast %cst_54 : f32 to vector<32x8xf32>
    %166 = arith.select %164, %165, %120 : vector<32x8xi1>, vector<32x8xf32>
    %cst_55 = arith.constant dense<0x7F800000> : vector<32xf32>
    %167 = vector.multi_reduction <minimumf>, %159, %cst_55 [1] : vector<32x32xf32> to vector<32xf32>
    %168 = vector.shape_cast %167 : vector<32xf32> to vector<32x1xf32>
    %169 = vector.broadcast %168 : vector<32x1xf32> to vector<32x32xf32>
    %170 = arith.cmpf oeq, %159, %169 : vector<32x32xf32>
    %cst_56 = arith.constant 3.000000e+38 : f32
    %171 = vector.broadcast %cst_56 : f32 to vector<32x32xf32>
    %172 = arith.select %170, %22, %171 : vector<32x32xi1>, vector<32x32xf32>
    %cst_57 = arith.constant dense<0x7F800000> : vector<32xf32>
    %173 = vector.multi_reduction <minimumf>, %172, %cst_57 [1] : vector<32x32xf32> to vector<32xf32>
    %174 = vector.shape_cast %173 : vector<32xf32> to vector<32x1xf32>
    %cst_58 = arith.constant dense<0x7F800000> : vector<32xf32>
    %175 = vector.multi_reduction <minimumf>, %166, %cst_58 [1] : vector<32x8xf32> to vector<32xf32>
    %176 = vector.shape_cast %175 : vector<32xf32> to vector<32x1xf32>
    %177 = vector.broadcast %176 : vector<32x1xf32> to vector<32x8xf32>
    %178 = arith.cmpf oeq, %166, %177 : vector<32x8xf32>
    %cst_59 = arith.constant 3.000000e+38 : f32
    %179 = vector.broadcast %cst_59 : f32 to vector<32x8xf32>
    %180 = arith.select %178, %24, %179 : vector<32x8xi1>, vector<32x8xf32>
    %cst_60 = arith.constant dense<0x7F800000> : vector<32xf32>
    %181 = vector.multi_reduction <minimumf>, %180, %cst_60 [1] : vector<32x8xf32> to vector<32xf32>
    %182 = vector.shape_cast %181 : vector<32xf32> to vector<32x1xf32>
    %183 = vector.broadcast %182 : vector<32x1xf32> to vector<32x8xf32>
    %184 = arith.cmpf oeq, %24, %183 : vector<32x8xf32>
    %cst_61 = arith.constant 3.000000e+38 : f32
    %185 = vector.broadcast %cst_61 : f32 to vector<32x8xf32>
    %186 = arith.select %184, %26, %185 : vector<32x8xi1>, vector<32x8xf32>
    %cst_62 = arith.constant dense<0x7F800000> : vector<32xf32>
    %187 = vector.multi_reduction <minimumf>, %186, %cst_62 [1] : vector<32x8xf32> to vector<32xf32>
    %188 = vector.shape_cast %187 : vector<32xf32> to vector<32x1xf32>
    %189 = arith.cmpf olt, %168, %176 : vector<32x1xf32>
    %190 = arith.select %189, %168, %176 : vector<32x1xi1>, vector<32x1xf32>
    %191 = arith.select %189, %174, %188 : vector<32x1xi1>, vector<32x1xf32>
    %cst_63 = arith.constant 3.000000e+00 : f32
    %192 = vector.broadcast %cst_63 : f32 to vector<32x8xf32>
    %193 = arith.cmpf oeq, %24, %192 : vector<32x8xf32>
    %194 = vector.shape_cast %190 : vector<32x1xf32> to vector<32x1xf32>
    %195 = vector.broadcast %194 : vector<32x1xf32> to vector<32x8xf32>
    %196 = arith.select %193, %195, %150 : vector<32x8xi1>, vector<32x8xf32>
    %197 = vector.shape_cast %191 : vector<32x1xf32> to vector<32x1xf32>
    %198 = vector.broadcast %197 : vector<32x1xf32> to vector<32x8xf32>
    %199 = arith.select %193, %198, %153 : vector<32x8xi1>, vector<32x8xf32>
    %200 = vector.broadcast %174 : vector<32x1xf32> to vector<32x32xf32>
    %201 = arith.cmpf oeq, %22, %200 : vector<32x32xf32>
    %202 = vector.broadcast %189 : vector<32x1xi1> to vector<32x32xi1>
    %203 = arith.andi %202, %201 : vector<32x32xi1>
    %cst_64 = arith.constant 0x7F800000 : f32
    %204 = vector.broadcast %cst_64 : f32 to vector<32x32xf32>
    %205 = arith.select %203, %204, %159 : vector<32x32xi1>, vector<32x32xf32>
    %cst_65 = arith.constant dense<true> : vector<32x1xi1>
    %206 = arith.xori %189, %cst_65 : vector<32x1xi1>
    %207 = vector.broadcast %182 : vector<32x1xf32> to vector<32x8xf32>
    %208 = arith.cmpf oeq, %24, %207 : vector<32x8xf32>
    %209 = vector.broadcast %206 : vector<32x1xi1> to vector<32x8xi1>
    %210 = arith.andi %209, %208 : vector<32x8xi1>
    %cst_66 = arith.constant 0x7F800000 : f32
    %211 = vector.broadcast %cst_66 : f32 to vector<32x8xf32>
    %212 = arith.select %210, %211, %166 : vector<32x8xi1>, vector<32x8xf32>
    %cst_67 = arith.constant dense<0x7F800000> : vector<32xf32>
    %213 = vector.multi_reduction <minimumf>, %205, %cst_67 [1] : vector<32x32xf32> to vector<32xf32>
    %214 = vector.shape_cast %213 : vector<32xf32> to vector<32x1xf32>
    %215 = vector.broadcast %214 : vector<32x1xf32> to vector<32x32xf32>
    %216 = arith.cmpf oeq, %205, %215 : vector<32x32xf32>
    %cst_68 = arith.constant 3.000000e+38 : f32
    %217 = vector.broadcast %cst_68 : f32 to vector<32x32xf32>
    %218 = arith.select %216, %22, %217 : vector<32x32xi1>, vector<32x32xf32>
    %cst_69 = arith.constant dense<0x7F800000> : vector<32xf32>
    %219 = vector.multi_reduction <minimumf>, %218, %cst_69 [1] : vector<32x32xf32> to vector<32xf32>
    %220 = vector.shape_cast %219 : vector<32xf32> to vector<32x1xf32>
    %cst_70 = arith.constant dense<0x7F800000> : vector<32xf32>
    %221 = vector.multi_reduction <minimumf>, %212, %cst_70 [1] : vector<32x8xf32> to vector<32xf32>
    %222 = vector.shape_cast %221 : vector<32xf32> to vector<32x1xf32>
    %223 = vector.broadcast %222 : vector<32x1xf32> to vector<32x8xf32>
    %224 = arith.cmpf oeq, %212, %223 : vector<32x8xf32>
    %cst_71 = arith.constant 3.000000e+38 : f32
    %225 = vector.broadcast %cst_71 : f32 to vector<32x8xf32>
    %226 = arith.select %224, %24, %225 : vector<32x8xi1>, vector<32x8xf32>
    %cst_72 = arith.constant dense<0x7F800000> : vector<32xf32>
    %227 = vector.multi_reduction <minimumf>, %226, %cst_72 [1] : vector<32x8xf32> to vector<32xf32>
    %228 = vector.shape_cast %227 : vector<32xf32> to vector<32x1xf32>
    %229 = vector.broadcast %228 : vector<32x1xf32> to vector<32x8xf32>
    %230 = arith.cmpf oeq, %24, %229 : vector<32x8xf32>
    %cst_73 = arith.constant 3.000000e+38 : f32
    %231 = vector.broadcast %cst_73 : f32 to vector<32x8xf32>
    %232 = arith.select %230, %26, %231 : vector<32x8xi1>, vector<32x8xf32>
    %cst_74 = arith.constant dense<0x7F800000> : vector<32xf32>
    %233 = vector.multi_reduction <minimumf>, %232, %cst_74 [1] : vector<32x8xf32> to vector<32xf32>
    %234 = vector.shape_cast %233 : vector<32xf32> to vector<32x1xf32>
    %235 = arith.cmpf olt, %214, %222 : vector<32x1xf32>
    %236 = arith.select %235, %214, %222 : vector<32x1xi1>, vector<32x1xf32>
    %237 = arith.select %235, %220, %234 : vector<32x1xi1>, vector<32x1xf32>
    %cst_75 = arith.constant 4.000000e+00 : f32
    %238 = vector.broadcast %cst_75 : f32 to vector<32x8xf32>
    %239 = arith.cmpf oeq, %24, %238 : vector<32x8xf32>
    %240 = vector.shape_cast %236 : vector<32x1xf32> to vector<32x1xf32>
    %241 = vector.broadcast %240 : vector<32x1xf32> to vector<32x8xf32>
    %242 = arith.select %239, %241, %196 : vector<32x8xi1>, vector<32x8xf32>
    %243 = vector.shape_cast %237 : vector<32x1xf32> to vector<32x1xf32>
    %244 = vector.broadcast %243 : vector<32x1xf32> to vector<32x8xf32>
    %245 = arith.select %239, %244, %199 : vector<32x8xi1>, vector<32x8xf32>
    %246 = vector.broadcast %220 : vector<32x1xf32> to vector<32x32xf32>
    %247 = arith.cmpf oeq, %22, %246 : vector<32x32xf32>
    %248 = vector.broadcast %235 : vector<32x1xi1> to vector<32x32xi1>
    %249 = arith.andi %248, %247 : vector<32x32xi1>
    %cst_76 = arith.constant 0x7F800000 : f32
    %250 = vector.broadcast %cst_76 : f32 to vector<32x32xf32>
    %251 = arith.select %249, %250, %205 : vector<32x32xi1>, vector<32x32xf32>
    %cst_77 = arith.constant dense<true> : vector<32x1xi1>
    %252 = arith.xori %235, %cst_77 : vector<32x1xi1>
    %253 = vector.broadcast %228 : vector<32x1xf32> to vector<32x8xf32>
    %254 = arith.cmpf oeq, %24, %253 : vector<32x8xf32>
    %255 = vector.broadcast %252 : vector<32x1xi1> to vector<32x8xi1>
    %256 = arith.andi %255, %254 : vector<32x8xi1>
    %cst_78 = arith.constant 0x7F800000 : f32
    %257 = vector.broadcast %cst_78 : f32 to vector<32x8xf32>
    %258 = arith.select %256, %257, %212 : vector<32x8xi1>, vector<32x8xf32>
    %cst_79 = arith.constant dense<0x7F800000> : vector<32xf32>
    %259 = vector.multi_reduction <minimumf>, %251, %cst_79 [1] : vector<32x32xf32> to vector<32xf32>
    %260 = vector.shape_cast %259 : vector<32xf32> to vector<32x1xf32>
    %261 = vector.broadcast %260 : vector<32x1xf32> to vector<32x32xf32>
    %262 = arith.cmpf oeq, %251, %261 : vector<32x32xf32>
    %cst_80 = arith.constant 3.000000e+38 : f32
    %263 = vector.broadcast %cst_80 : f32 to vector<32x32xf32>
    %264 = arith.select %262, %22, %263 : vector<32x32xi1>, vector<32x32xf32>
    %cst_81 = arith.constant dense<0x7F800000> : vector<32xf32>
    %265 = vector.multi_reduction <minimumf>, %264, %cst_81 [1] : vector<32x32xf32> to vector<32xf32>
    %266 = vector.shape_cast %265 : vector<32xf32> to vector<32x1xf32>
    %cst_82 = arith.constant dense<0x7F800000> : vector<32xf32>
    %267 = vector.multi_reduction <minimumf>, %258, %cst_82 [1] : vector<32x8xf32> to vector<32xf32>
    %268 = vector.shape_cast %267 : vector<32xf32> to vector<32x1xf32>
    %269 = vector.broadcast %268 : vector<32x1xf32> to vector<32x8xf32>
    %270 = arith.cmpf oeq, %258, %269 : vector<32x8xf32>
    %cst_83 = arith.constant 3.000000e+38 : f32
    %271 = vector.broadcast %cst_83 : f32 to vector<32x8xf32>
    %272 = arith.select %270, %24, %271 : vector<32x8xi1>, vector<32x8xf32>
    %cst_84 = arith.constant dense<0x7F800000> : vector<32xf32>
    %273 = vector.multi_reduction <minimumf>, %272, %cst_84 [1] : vector<32x8xf32> to vector<32xf32>
    %274 = vector.shape_cast %273 : vector<32xf32> to vector<32x1xf32>
    %275 = vector.broadcast %274 : vector<32x1xf32> to vector<32x8xf32>
    %276 = arith.cmpf oeq, %24, %275 : vector<32x8xf32>
    %cst_85 = arith.constant 3.000000e+38 : f32
    %277 = vector.broadcast %cst_85 : f32 to vector<32x8xf32>
    %278 = arith.select %276, %26, %277 : vector<32x8xi1>, vector<32x8xf32>
    %cst_86 = arith.constant dense<0x7F800000> : vector<32xf32>
    %279 = vector.multi_reduction <minimumf>, %278, %cst_86 [1] : vector<32x8xf32> to vector<32xf32>
    %280 = vector.shape_cast %279 : vector<32xf32> to vector<32x1xf32>
    %281 = arith.cmpf olt, %260, %268 : vector<32x1xf32>
    %282 = arith.select %281, %260, %268 : vector<32x1xi1>, vector<32x1xf32>
    %283 = arith.select %281, %266, %280 : vector<32x1xi1>, vector<32x1xf32>
    %cst_87 = arith.constant 5.000000e+00 : f32
    %284 = vector.broadcast %cst_87 : f32 to vector<32x8xf32>
    %285 = arith.cmpf oeq, %24, %284 : vector<32x8xf32>
    %286 = vector.shape_cast %282 : vector<32x1xf32> to vector<32x1xf32>
    %287 = vector.broadcast %286 : vector<32x1xf32> to vector<32x8xf32>
    %288 = arith.select %285, %287, %242 : vector<32x8xi1>, vector<32x8xf32>
    %289 = vector.shape_cast %283 : vector<32x1xf32> to vector<32x1xf32>
    %290 = vector.broadcast %289 : vector<32x1xf32> to vector<32x8xf32>
    %291 = arith.select %285, %290, %245 : vector<32x8xi1>, vector<32x8xf32>
    %292 = vector.broadcast %266 : vector<32x1xf32> to vector<32x32xf32>
    %293 = arith.cmpf oeq, %22, %292 : vector<32x32xf32>
    %294 = vector.broadcast %281 : vector<32x1xi1> to vector<32x32xi1>
    %295 = arith.andi %294, %293 : vector<32x32xi1>
    %cst_88 = arith.constant 0x7F800000 : f32
    %296 = vector.broadcast %cst_88 : f32 to vector<32x32xf32>
    %297 = arith.select %295, %296, %251 : vector<32x32xi1>, vector<32x32xf32>
    %cst_89 = arith.constant dense<true> : vector<32x1xi1>
    %298 = arith.xori %281, %cst_89 : vector<32x1xi1>
    %299 = vector.broadcast %274 : vector<32x1xf32> to vector<32x8xf32>
    %300 = arith.cmpf oeq, %24, %299 : vector<32x8xf32>
    %301 = vector.broadcast %298 : vector<32x1xi1> to vector<32x8xi1>
    %302 = arith.andi %301, %300 : vector<32x8xi1>
    %cst_90 = arith.constant 0x7F800000 : f32
    %303 = vector.broadcast %cst_90 : f32 to vector<32x8xf32>
    %304 = arith.select %302, %303, %258 : vector<32x8xi1>, vector<32x8xf32>
    %cst_91 = arith.constant dense<0x7F800000> : vector<32xf32>
    %305 = vector.multi_reduction <minimumf>, %297, %cst_91 [1] : vector<32x32xf32> to vector<32xf32>
    %306 = vector.shape_cast %305 : vector<32xf32> to vector<32x1xf32>
    %307 = vector.broadcast %306 : vector<32x1xf32> to vector<32x32xf32>
    %308 = arith.cmpf oeq, %297, %307 : vector<32x32xf32>
    %cst_92 = arith.constant 3.000000e+38 : f32
    %309 = vector.broadcast %cst_92 : f32 to vector<32x32xf32>
    %310 = arith.select %308, %22, %309 : vector<32x32xi1>, vector<32x32xf32>
    %cst_93 = arith.constant dense<0x7F800000> : vector<32xf32>
    %311 = vector.multi_reduction <minimumf>, %310, %cst_93 [1] : vector<32x32xf32> to vector<32xf32>
    %312 = vector.shape_cast %311 : vector<32xf32> to vector<32x1xf32>
    %cst_94 = arith.constant dense<0x7F800000> : vector<32xf32>
    %313 = vector.multi_reduction <minimumf>, %304, %cst_94 [1] : vector<32x8xf32> to vector<32xf32>
    %314 = vector.shape_cast %313 : vector<32xf32> to vector<32x1xf32>
    %315 = vector.broadcast %314 : vector<32x1xf32> to vector<32x8xf32>
    %316 = arith.cmpf oeq, %304, %315 : vector<32x8xf32>
    %cst_95 = arith.constant 3.000000e+38 : f32
    %317 = vector.broadcast %cst_95 : f32 to vector<32x8xf32>
    %318 = arith.select %316, %24, %317 : vector<32x8xi1>, vector<32x8xf32>
    %cst_96 = arith.constant dense<0x7F800000> : vector<32xf32>
    %319 = vector.multi_reduction <minimumf>, %318, %cst_96 [1] : vector<32x8xf32> to vector<32xf32>
    %320 = vector.shape_cast %319 : vector<32xf32> to vector<32x1xf32>
    %321 = vector.broadcast %320 : vector<32x1xf32> to vector<32x8xf32>
    %322 = arith.cmpf oeq, %24, %321 : vector<32x8xf32>
    %cst_97 = arith.constant 3.000000e+38 : f32
    %323 = vector.broadcast %cst_97 : f32 to vector<32x8xf32>
    %324 = arith.select %322, %26, %323 : vector<32x8xi1>, vector<32x8xf32>
    %cst_98 = arith.constant dense<0x7F800000> : vector<32xf32>
    %325 = vector.multi_reduction <minimumf>, %324, %cst_98 [1] : vector<32x8xf32> to vector<32xf32>
    %326 = vector.shape_cast %325 : vector<32xf32> to vector<32x1xf32>
    %327 = arith.cmpf olt, %306, %314 : vector<32x1xf32>
    %328 = arith.select %327, %306, %314 : vector<32x1xi1>, vector<32x1xf32>
    %329 = arith.select %327, %312, %326 : vector<32x1xi1>, vector<32x1xf32>
    %cst_99 = arith.constant 6.000000e+00 : f32
    %330 = vector.broadcast %cst_99 : f32 to vector<32x8xf32>
    %331 = arith.cmpf oeq, %24, %330 : vector<32x8xf32>
    %332 = vector.shape_cast %328 : vector<32x1xf32> to vector<32x1xf32>
    %333 = vector.broadcast %332 : vector<32x1xf32> to vector<32x8xf32>
    %334 = arith.select %331, %333, %288 : vector<32x8xi1>, vector<32x8xf32>
    %335 = vector.shape_cast %329 : vector<32x1xf32> to vector<32x1xf32>
    %336 = vector.broadcast %335 : vector<32x1xf32> to vector<32x8xf32>
    %337 = arith.select %331, %336, %291 : vector<32x8xi1>, vector<32x8xf32>
    %338 = vector.broadcast %312 : vector<32x1xf32> to vector<32x32xf32>
    %339 = arith.cmpf oeq, %22, %338 : vector<32x32xf32>
    %340 = vector.broadcast %327 : vector<32x1xi1> to vector<32x32xi1>
    %341 = arith.andi %340, %339 : vector<32x32xi1>
    %cst_100 = arith.constant 0x7F800000 : f32
    %342 = vector.broadcast %cst_100 : f32 to vector<32x32xf32>
    %343 = arith.select %341, %342, %297 : vector<32x32xi1>, vector<32x32xf32>
    %cst_101 = arith.constant dense<true> : vector<32x1xi1>
    %344 = arith.xori %327, %cst_101 : vector<32x1xi1>
    %345 = vector.broadcast %320 : vector<32x1xf32> to vector<32x8xf32>
    %346 = arith.cmpf oeq, %24, %345 : vector<32x8xf32>
    %347 = vector.broadcast %344 : vector<32x1xi1> to vector<32x8xi1>
    %348 = arith.andi %347, %346 : vector<32x8xi1>
    %cst_102 = arith.constant 0x7F800000 : f32
    %349 = vector.broadcast %cst_102 : f32 to vector<32x8xf32>
    %350 = arith.select %348, %349, %304 : vector<32x8xi1>, vector<32x8xf32>
    %cst_103 = arith.constant dense<0x7F800000> : vector<32xf32>
    %351 = vector.multi_reduction <minimumf>, %343, %cst_103 [1] : vector<32x32xf32> to vector<32xf32>
    %352 = vector.shape_cast %351 : vector<32xf32> to vector<32x1xf32>
    %353 = vector.broadcast %352 : vector<32x1xf32> to vector<32x32xf32>
    %354 = arith.cmpf oeq, %343, %353 : vector<32x32xf32>
    %cst_104 = arith.constant 3.000000e+38 : f32
    %355 = vector.broadcast %cst_104 : f32 to vector<32x32xf32>
    %356 = arith.select %354, %22, %355 : vector<32x32xi1>, vector<32x32xf32>
    %cst_105 = arith.constant dense<0x7F800000> : vector<32xf32>
    %357 = vector.multi_reduction <minimumf>, %356, %cst_105 [1] : vector<32x32xf32> to vector<32xf32>
    %358 = vector.shape_cast %357 : vector<32xf32> to vector<32x1xf32>
    %cst_106 = arith.constant dense<0x7F800000> : vector<32xf32>
    %359 = vector.multi_reduction <minimumf>, %350, %cst_106 [1] : vector<32x8xf32> to vector<32xf32>
    %360 = vector.shape_cast %359 : vector<32xf32> to vector<32x1xf32>
    %361 = vector.broadcast %360 : vector<32x1xf32> to vector<32x8xf32>
    %362 = arith.cmpf oeq, %350, %361 : vector<32x8xf32>
    %cst_107 = arith.constant 3.000000e+38 : f32
    %363 = vector.broadcast %cst_107 : f32 to vector<32x8xf32>
    %364 = arith.select %362, %24, %363 : vector<32x8xi1>, vector<32x8xf32>
    %cst_108 = arith.constant dense<0x7F800000> : vector<32xf32>
    %365 = vector.multi_reduction <minimumf>, %364, %cst_108 [1] : vector<32x8xf32> to vector<32xf32>
    %366 = vector.shape_cast %365 : vector<32xf32> to vector<32x1xf32>
    %367 = vector.broadcast %366 : vector<32x1xf32> to vector<32x8xf32>
    %368 = arith.cmpf oeq, %24, %367 : vector<32x8xf32>
    %cst_109 = arith.constant 3.000000e+38 : f32
    %369 = vector.broadcast %cst_109 : f32 to vector<32x8xf32>
    %370 = arith.select %368, %26, %369 : vector<32x8xi1>, vector<32x8xf32>
    %cst_110 = arith.constant dense<0x7F800000> : vector<32xf32>
    %371 = vector.multi_reduction <minimumf>, %370, %cst_110 [1] : vector<32x8xf32> to vector<32xf32>
    %372 = vector.shape_cast %371 : vector<32xf32> to vector<32x1xf32>
    %373 = arith.cmpf olt, %352, %360 : vector<32x1xf32>
    %374 = arith.select %373, %352, %360 : vector<32x1xi1>, vector<32x1xf32>
    %375 = arith.select %373, %358, %372 : vector<32x1xi1>, vector<32x1xf32>
    %cst_111 = arith.constant 7.000000e+00 : f32
    %376 = vector.broadcast %cst_111 : f32 to vector<32x8xf32>
    %377 = arith.cmpf oeq, %24, %376 : vector<32x8xf32>
    %378 = vector.shape_cast %374 : vector<32x1xf32> to vector<32x1xf32>
    %379 = vector.broadcast %378 : vector<32x1xf32> to vector<32x8xf32>
    %380 = arith.select %377, %379, %334 : vector<32x8xi1>, vector<32x8xf32>
    %381 = vector.shape_cast %375 : vector<32x1xf32> to vector<32x1xf32>
    %382 = vector.broadcast %381 : vector<32x1xf32> to vector<32x8xf32>
    %383 = arith.select %377, %382, %337 : vector<32x8xi1>, vector<32x8xf32>
    %c0_112 = arith.constant 0 : index
    %c0_113 = arith.constant 0 : index
    %384 = vector.load %arg8[%c0_112, %c0_113] : memref<32x8xf32, #tpu.memory_space<vmem>>, vector<32x8xf32>
    tpu.vector_store %arg8[%c0_112, %c0_113], %380 {strides = array<i32>} : memref<32x8xf32, #tpu.memory_space<vmem>>, vector<32x8xf32>,
    %c0_114 = arith.constant 0 : index
    %c0_115 = arith.constant 0 : index
    %385 = vector.load %arg9[%c0_114, %c0_115] : memref<32x8xf32, #tpu.memory_space<vmem>>, vector<32x8xf32>
    tpu.vector_store %arg9[%c0_114, %c0_115], %383 {strides = array<i32>} : memref<32x8xf32, #tpu.memory_space<vmem>>, vector<32x8xf32>,
    %c0_i32_116 = arith.constant 0 : i32
    %386 = arith.cmpi eq, %arg2, %c0_i32_116 : i32
    %387 = arith.extui %386 : i1 to i32
    %c0_i32_117 = arith.constant 0 : i32
    %388 = arith.cmpi ne, %387, %c0_i32_117 : i32
    scf.if %388 {
      %c0_118 = arith.constant 0 : index
      %c0_119 = arith.constant 0 : index
      %389 = vector.load %arg9[%c0_118, %c0_119] : memref<32x8xf32, #tpu.memory_space<vmem>>, vector<32x8xf32>
      %390 = arith.fptosi %389 : vector<32x8xf32> to vector<32x8xi32>
      %c0_120 = arith.constant 0 : index
      %c0_121 = arith.constant 0 : index
      %c0_122 = arith.constant 0 : index
      %391 = vector.load %arg7[%c0_120, %c0_121, %c0_122] : memref<1x32x8xi32, #tpu.memory_space<vmem>>, vector<1x32x8xi32>
      %392 = vector.shape_cast %391 : vector<1x32x8xi32> to vector<32x8xi32>
      %393 = vector.shape_cast %390 : vector<32x8xi32> to vector<1x32x8xi32>
      tpu.vector_store %arg7[%c0_120, %c0_121, %c0_122], %393 {strides = array<i32>} : memref<1x32x8xi32, #tpu.memory_space<vmem>>, vector<1x32x8xi32>,
    } else {
    }
    return
  }
  func.func @transform_0(%arg0: i32, %arg1: i32, %arg2: i32) -> (i32, i32, i32) {
    %c0_i32 = arith.constant 0 : i32
    %c0_i32_0 = arith.constant 0 : i32
    return %arg0, %arg1, %c0_i32 : i32, i32, i32
  }
  func.func @transform_1(%arg0: i32, %arg1: i32, %arg2: i32) -> (i32, i32, i32) {
    %c0_i32 = arith.constant 0 : i32
    %c0_i32_0 = arith.constant 0 : i32
    return %arg0, %c0_i32, %arg2 : i32, i32, i32
  }
  func.func @transform_2(%arg0: i32, %arg1: i32, %arg2: i32) -> (i32, i32, i32) {
    %c0_i32 = arith.constant 0 : i32
    %c0_i32_0 = arith.constant 0 : i32
    return %arg0, %arg1, %c0_i32 : i32, i32, i32
  }
  func.func @transform_3(%arg0: i32, %arg1: i32, %arg2: i32) -> (i32, i32, i32) {
    %c0_i32 = arith.constant 0 : i32
    %c0_i32_0 = arith.constant 0 : i32
    return %arg0, %c0_i32, %arg2 : i32, i32, i32
  }
  func.func @transform_4(%arg0: i32, %arg1: i32, %arg2: i32) -> (i32, i32, i32) {
    %c0_i32 = arith.constant 0 : i32
    %c0_i32_0 = arith.constant 0 : i32
    return %arg0, %arg1, %c0_i32 : i32, i32, i32
  }
}

</mosaic_0001>

<llo_original>
// kernel: tpu_custom_call.1
$region0: #{tpu_custom_call.1}
  #allocation0 [shape = 'u32[]', space=smem, size = 0x4, offset = 0x4, fixed_abs, tag = 'smem constant byte address 0x4 - core index']
  #allocation1 [shape = 'u32[144,128]{1,0:T(1,128)}', space=vmem, size = 0x12000, scoped, tag = 'internal scratch']
  #allocation2 [shape = 'f32[32,8]{1,0:T(8,128)}', space=vmem, size = 0x4000, scoped, tag = 'scratch operand']
  #allocation3 [shape = 'f32[32,8]{1,0:T(8,128)}', space=vmem, size = 0x4000, scoped, tag = 'scratch operand']
  %s0 = inlined_call_operand.vmem [shape: f32[2,32,3], index: 0, kind: input, shape index: {}]
  %s1 = inlined_call_operand.vmem [shape: f32[2,3,32], index: 1, kind: input, shape index: {}]
  %s2 = inlined_call_operand.vmem [shape: f32[2,32,1], index: 2, kind: input, shape index: {}]
  %s3 = inlined_call_operand.vmem [shape: f32[2,1,32], index: 3, kind: input, shape index: {}]
  %s4 = inlined_call_operand.vmem [shape: s32[2,32,8], index: 4, kind: output, shape index: {}]
  %s5 = sld [smem:[#allocation0]]
  $region57: #{tpu_custom_call.1} parent=0
    _
  %s7 = ssub.s32 1, %s5
  %s8 = scalar_select 0, %s7, %s5
  loop: start=0, step=1, limit=4
  $region2: #{tpu_custom_call.1} parent=0 // loop_pre_header
    _
  $region3: #{tpu_custom_call.1} parent=0 // loop_header
    %s10 = sphi 0, %s14
    %p11 = scmp.ge.s32.totalorder %s10, 4
    %s17 = sphi 0, %s36
    %s18 = sphi 0, %s32
    %s19 = sphi 0, %s28
    %s20 = sphi 0, %s17
    %s21 = sphi 0, %s18
    %s22 = sphi 0, %s19
    %s23 = sphi 0, %s20
    %s24 = sphi 0, %s21
    %s25 = sphi 0, %s22
    %s41 = sphi 0, %s43
    %s44 = sphi 0, %s41
    %s45 = sphi 0, %s44
    %s61 = sphi 0, %s45
    %s69 = sphi 0, %s71
    %s72 = sphi 0, %s69
    %s73 = sphi 0, %s72
    %s89 = sphi 0, %s73
    %s97 = sphi 0, %s99
    %s100 = sphi 0, %s97
    %s101 = sphi 0, %s100
    %s117 = sphi 0, %s101
    %s125 = sphi 0, %s127
    %s128 = sphi 0, %s125
    %s129 = sphi 0, %s128
    %s145 = sphi 0, %s129
    %s153 = sphi 0, %s155
    %s156 = sphi 0, %s153
    %s157 = sphi 0, %s156
    %s173 = sphi 0, %s157
  $region4: #{tpu_custom_call.1} parent=0 // loop_header_branch
    %13 = sbr.rel (%p11) target = $region8
  $region5: #{tpu_custom_call.1} parent=0 // loop_body
    %s15 = ssub.s32 %s10, 1
    %s16 = ssub.s32 %s10, 2
    %s26 = sadd.s32 1, %s19
    %p27 = scmp.ge.s32.totalorder %s26, 1
    %s28 = scalar_select %p27, 0, %s26
    %s29 = sadd.s32 1, %s18
    %s30 = scalar_select %p27, %s29, %s18
    %p31 = scmp.ge.s32.totalorder %s30, 1
    %s32 = scalar_select %p31, 0, %s30
    %s33 = sadd.s32 1, %s17
    %s34 = scalar_select %p31, %s33, %s17
    %p35 = scmp.ge.s32.totalorder %s34, 2
    %s36 = scalar_select %p35, 0, %s34
    %s37 = ssub.s32 %s17, %s36
    %s38 = ssub.s32 %s18, %s32
    %s39 = sor.u32 %s37, %s38
    %p40 = scmp.eq.s32.totalorder %s39, 0
    %s42 = sadd.s32 %s41, 1
    %s43 = scalar_select %p40, %s41, %s42
    %p46 = pneg %p40
    %p47 = scmp.eq.s32.totalorder %s10, 1
    %p48 = por %p46, %p47
    %p49 = scmp.ne.s32.totalorder %s41, %s44
    %p50 = scmp.eq.s32.totalorder %s10, 0
    %p51 = por %p49, %p50
    %p52 = scmp.ne.s32.totalorder %s41, %s44
    %p53 = scmp.eq.s32.totalorder %s15, 1
    %p54 = por %p52, %p53
    %p55 = scmp.ne.s32.totalorder %s44, %s45
    %p56 = scmp.eq.s32.totalorder %s15, 0
    %p57 = por %p55, %p56
    %p58 = scmp.ne.s32.totalorder %s44, %s45
    %p59 = scmp.eq.s32.totalorder %s16, 1
    %p60 = por %p58, %p59
    %p62 = scmp.ne.s32.totalorder %s45, %s61
    %p63 = scmp.eq.s32.totalorder %s16, 0
    %p64 = por %p62, %p63
    %s65 = ssub.s32 %s17, %s36
    %s66 = ssub.s32 %s19, %s28
    %s67 = sor.u32 %s65, %s66
    %p68 = scmp.eq.s32.totalorder %s67, 0
    %s70 = sadd.s32 %s69, 1
    %s71 = scalar_select %p68, %s69, %s70
    %p74 = pneg %p68
    %p75 = scmp.eq.s32.totalorder %s10, 1
    %p76 = por %p74, %p75
    %p77 = scmp.ne.s32.totalorder %s69, %s72
    %p78 = scmp.eq.s32.totalorder %s10, 0
    %p79 = por %p77, %p78
    %p80 = scmp.ne.s32.totalorder %s69, %s72
    %p81 = scmp.eq.s32.totalorder %s15, 1
    %p82 = por %p80, %p81
    %p83 = scmp.ne.s32.totalorder %s72, %s73
    %p84 = scmp.eq.s32.totalorder %s15, 0
    %p85 = por %p83, %p84
    %p86 = scmp.ne.s32.totalorder %s72, %s73
    %p87 = scmp.eq.s32.totalorder %s16, 1
    %p88 = por %p86, %p87
    %p90 = scmp.ne.s32.totalorder %s73, %s89
    %p91 = scmp.eq.s32.totalorder %s16, 0
    %p92 = por %p90, %p91
    %s93 = ssub.s32 %s17, %s36
    %s94 = ssub.s32 %s18, %s32
    %s95 = sor.u32 %s93, %s94
    %p96 = scmp.eq.s32.totalorder %s95, 0
    %s98 = sadd.s32 %s97, 1
    %s99 = scalar_select %p96, %s97, %s98
    %p102 = pneg %p96
    %p103 = scmp.eq.s32.totalorder %s10, 1
    %p104 = por %p102, %p103
    %p105 = scmp.ne.s32.totalorder %s97, %s100
    %p106 = scmp.eq.s32.totalorder %s10, 0
    %p107 = por %p105, %p106
    %p108 = scmp.ne.s32.totalorder %s97, %s100
    %p109 = scmp.eq.s32.totalorder %s15, 1
    %p110 = por %p108, %p109
    %p111 = scmp.ne.s32.totalorder %s100, %s101
    %p112 = scmp.eq.s32.totalorder %s15, 0
    %p113 = por %p111, %p112
    %p114 = scmp.ne.s32.totalorder %s100, %s101
    %p115 = scmp.eq.s32.totalorder %s16, 1
    %p116 = por %p114, %p115
    %p118 = scmp.ne.s32.totalorder %s101, %s117
    %p119 = scmp.eq.s32.totalorder %s16, 0
    %p120 = por %p118, %p119
    %s121 = ssub.s32 %s17, %s36
    %s122 = ssub.s32 %s19, %s28
    %s123 = sor.u32 %s121, %s122
    %p124 = scmp.eq.s32.totalorder %s123, 0
    %s126 = sadd.s32 %s125, 1
    %s127 = scalar_select %p124, %s125, %s126
    %p130 = pneg %p124
    %p131 = scmp.eq.s32.totalorder %s10, 1
    %p132 = por %p130, %p131
    %p133 = scmp.ne.s32.totalorder %s125, %s128
    %p134 = scmp.eq.s32.totalorder %s10, 0
    %p135 = por %p133, %p134
    %p136 = scmp.ne.s32.totalorder %s125, %s128
    %p137 = scmp.eq.s32.totalorder %s15, 1
    %p138 = por %p136, %p137
    %p139 = scmp.ne.s32.totalorder %s128, %s129
    %p140 = scmp.eq.s32.totalorder %s15, 0
    %p141 = por %p139, %p140
    %p142 = scmp.ne.s32.totalorder %s128, %s129
    %p143 = scmp.eq.s32.totalorder %s16, 1
    %p144 = por %p142, %p143
    %p146 = scmp.ne.s32.totalorder %s129, %s145
    %p147 = scmp.eq.s32.totalorder %s16, 0
    %p148 = por %p146, %p147
    %s149 = ssub.s32 %s17, %s36
    %s150 = ssub.s32 %s18, %s32
    %s151 = sor.u32 %s149, %s150
    %p152 = scmp.eq.s32.totalorder %s151, 0
    %s154 = sadd.s32 %s153, 1
    %s155 = scalar_select %p152, %s153, %s154
    %p158 = pneg %p152
    %p159 = scmp.eq.s32.totalorder %s10, 1
    %p160 = por %p158, %p159
    %p161 = scmp.ne.s32.totalorder %s153, %s156
    %p162 = scmp.eq.s32.totalorder %s10, 0
    %p163 = por %p161, %p162
    %p164 = scmp.ne.s32.totalorder %s153, %s156
    %p165 = scmp.eq.s32.totalorder %s15, 1
    %p166 = por %p164, %p165
    %p167 = scmp.ne.s32.totalorder %s156, %s157
    %p168 = scmp.eq.s32.totalorder %s15, 0
    %p169 = por %p167, %p168
    %p170 = scmp.ne.s32.totalorder %s156, %s157
    %p171 = scmp.eq.s32.totalorder %s16, 1
    %p172 = por %p170, %p171
    %p174 = scmp.ne.s32.totalorder %s157, %s173
    %p175 = scmp.eq.s32.totalorder %s16, 0
    %p176 = por %p174, %p175
    %p177 = scmp.le.s32.totalorder 1, %s10
    %p178 = scmp.lt.s32.totalorder %s10, 3
    %p179 = pnand %p177, %p178
    %p180 = pneg %p179
    // Predicated region
    $region9: #{tpu_custom_call.1} parent=5 // pred_check
      _
    $region10: #{tpu_custom_call.1} parent=5 // pred_check_branch
      %182 = sbr.rel (%p179) target = $region12
    $region11: #{tpu_custom_call.1} parent=5 // pred_region
      %s183 = ssub.s32 %s10, 1
    $region12: #{tpu_custom_call.1} parent=5 // pred_fallthru
      _
    %p184 = scmp.lt.s32.totalorder %s10, 2
    // Predicated region
    $region13: #{tpu_custom_call.1} parent=5 // pred_check
      %p185 = pneg %p184
    $region14: #{tpu_custom_call.1} parent=5 // pred_check_branch
      %187 = sbr.rel (%p185) target = $region16
    $region15: #{tpu_custom_call.1} parent=5 // pred_region
      // Predicated region
      $region17: #{tpu_custom_call.1} parent=15 // pred_check
        %p188 = pneg %p51
      $region18: #{tpu_custom_call.1} parent=15 // pred_check_branch
        %190 = sbr.rel (%p188) target = $region20
      $region19: #{tpu_custom_call.1} parent=15 // pred_region
        %s191 = smul.u32 4, %s18
        %p192 = scmp.lt.s32.totalorder %s17, 1
        %s193 = scalar_select %p192, %s17, 1
        %p194 = scmp.lt.s32.totalorder %s191, 3
        %s195 = scalar_select %p194, %s191, 3
        %s196 = smul.addr %s193, 4
        %s197 = sadd.s32 %s195, %s196
        %s198 = smul.addr %s197, 8
        %s199 = scalar_lea.vmem %s0, %s198
        %s200 = smul.u32 4, %s18
      $region20: #{tpu_custom_call.1} parent=15 // pred_fallthru
        _
      // Predicated region
      $region21: #{tpu_custom_call.1} parent=15 // pred_check
        %p201 = pneg %p79
      $region22: #{tpu_custom_call.1} parent=15 // pred_check_branch
        %203 = sbr.rel (%p201) target = $region24
      $region23: #{tpu_custom_call.1} parent=15 // pred_region
        %p204 = scmp.lt.s32.totalorder %s17, 1
        %s205 = scalar_select %p204, %s17, 1
        %p206 = scmp.lt.s32.totalorder %s19, 0
        %s207 = scalar_select %p206, %s19, 0
        %s208 = sadd.s32 %s207, %s205
        %s209 = smul.addr %s208, 4
        %s210 = scalar_lea.vmem %s1, %s209
      $region24: #{tpu_custom_call.1} parent=15 // pred_fallthru
        _
      // Predicated region
      $region25: #{tpu_custom_call.1} parent=15 // pred_check
        %p211 = pneg %p107
      $region26: #{tpu_custom_call.1} parent=15 // pred_check_branch
        %213 = sbr.rel (%p211) target = $region28
      $region27: #{tpu_custom_call.1} parent=15 // pred_region
        %s214 = smul.u32 4, %s18
        %p215 = scmp.lt.s32.totalorder %s17, 1
        %s216 = scalar_select %p215, %s17, 1
        %p217 = scmp.lt.s32.totalorder %s214, 3
        %s218 = scalar_select %p217, %s214, 3
        %s219 = smul.addr %s216, 4
        %s220 = sadd.s32 %s218, %s219
        %s221 = smul.addr %s220, 8
        %s222 = scalar_lea.vmem %s2, %s221
        %s223 = smul.u32 4, %s18
      $region28: #{tpu_custom_call.1} parent=15 // pred_fallthru
        _
      // Predicated region
      $region29: #{tpu_custom_call.1} parent=15 // pred_check
        %p224 = pneg %p135
      $region30: #{tpu_custom_call.1} parent=15 // pred_check_branch
        %226 = sbr.rel (%p224) target = $region32
      $region31: #{tpu_custom_call.1} parent=15 // pred_region
        %p227 = scmp.lt.s32.totalorder %s17, 1
        %s228 = scalar_select %p227, %s17, 1
        %p229 = scmp.lt.s32.totalorder %s19, 0
        %s230 = scalar_select %p229, %s19, 0
        %s231 = sadd.s32 %s230, %s228
        %s232 = scalar_lea.vmem %s3, %s231
      $region32: #{tpu_custom_call.1} parent=15 // pred_fallthru
        _
    $region16: #{tpu_custom_call.1} parent=5 // pred_fallthru
      _
    %p233 = scmp.le.s32.totalorder 1, %s10
    %p234 = scmp.lt.s32.totalorder %s10, 3
    %p235 = pnand %p233, %p234
    %p236 = pneg %p235
    // Predicated region
    $region33: #{tpu_custom_call.1} parent=5 // pred_check
      _
    $region34: #{tpu_custom_call.1} parent=5 // pred_check_branch
      %238 = sbr.rel (%p235) target = $region36
    $region35: #{tpu_custom_call.1} parent=5 // pred_region
      %s239 = ssub.s32 %s10, 1
      %s240 = smul.u32 4, %s21
      %p241 = scmp.lt.s32.totalorder %s20, 1
      %s242 = scalar_select %p241, %s20, 1
      %p243 = scmp.lt.s32.totalorder %s240, 3
      %s244 = scalar_select %p243, %s240, 3
      %s245 = smul.addr %s242, 4
      %s246 = sadd.s32 %s244, %s245
      %s247 = smul.addr %s246, 8
      %s248 = scalar_lea.vmem %s0, %s247
      %p249 = pneg %p57
      %p250 = pneg %p54
      %p251 = scmp.lt.s32.totalorder %s20, 1
      %s252 = scalar_select %p251, %s20, 1
      %p253 = scmp.lt.s32.totalorder %s22, 0
      %s254 = scalar_select %p253, %s22, 0
      %s255 = sadd.s32 %s254, %s252
      %s256 = smul.addr %s255, 4
      %s257 = scalar_lea.vmem %s1, %s256
      %p258 = pneg %p85
      %p259 = pneg %p82
      %s260 = smul.u32 4, %s21
      %p261 = scmp.lt.s32.totalorder %s20, 1
      %s262 = scalar_select %p261, %s20, 1
      %p263 = scmp.lt.s32.totalorder %s260, 3
      %s264 = scalar_select %p263, %s260, 3
      %s265 = smul.addr %s262, 4
      %s266 = sadd.s32 %s264, %s265
      %s267 = smul.addr %s266, 8
      %s268 = scalar_lea.vmem %s2, %s267
      %p269 = pneg %p113
      %p270 = pneg %p110
      %p271 = scmp.lt.s32.totalorder %s20, 1
      %s272 = scalar_select %p271, %s20, 1
      %p273 = scmp.lt.s32.totalorder %s22, 0
      %s274 = scalar_select %p273, %s22, 0
      %s275 = sadd.s32 %s274, %s272
      %s276 = scalar_lea.vmem %s3, %s275
      %p277 = pneg %p141
      %p278 = pneg %p138
      %p279 = pneg %p169
      %p280 = pneg %p166
      %s281 = smul.u32 4, %s21
      %p282 = scmp.lt.s32.totalorder %s20, 1
      %s283 = scalar_select %p282, %s20, 1
      %p284 = scmp.lt.s32.totalorder %s281, 3
      %s285 = scalar_select %p284, %s281, 3
      %s286 = smul.addr %s283, 4
      %s287 = sadd.s32 %s285, %s286
      %s288 = smul.addr %s287, 8
      %s289 = scalar_lea.vmem %s4, %s288
      %s290 = smul.u32 4, %s21
      %p291 = scmp.lt.s32.totalorder %s20, 1
      %s292 = scalar_select %p291, %s20, 1
      %p293 = scmp.lt.s32.totalorder %s290, 3
      %s294 = scalar_select %p293, %s290, 3
      %s295 = smul.addr %s292, 4
      %s296 = sadd.s32 %s294, %s295
      %s297 = smul.addr %s296, 8
      %s298 = scalar_lea.vmem %s0, %s297
      %s299 = smul.u32 4, %s21
      %p300 = scmp.lt.s32.totalorder %s20, 1
      %s301 = scalar_select %p300, %s20, 1
      %p302 = scmp.lt.s32.totalorder %s22, 0
      %s303 = scalar_select %p302, %s22, 0
      %s304 = sadd.s32 %s303, %s301
      %s305 = smul.addr %s304, 4
      %s306 = scalar_lea.vmem %s1, %s305
      %s307 = smul.u32 4, %s21
      %p308 = scmp.lt.s32.totalorder %s20, 1
      %s309 = scalar_select %p308, %s20, 1
      %p310 = scmp.lt.s32.totalorder %s307, 3
      %s311 = scalar_select %p310, %s307, 3
      %s312 = smul.addr %s309, 4
      %s313 = sadd.s32 %s311, %s312
      %s314 = smul.addr %s313, 8
      %s315 = scalar_lea.vmem %s2, %s314
      %s316 = smul.u32 4, %s21
      %p317 = scmp.lt.s32.totalorder %s20, 1
      %s318 = scalar_select %p317, %s20, 1
      %p319 = scmp.lt.s32.totalorder %s22, 0
      %s320 = scalar_select %p319, %s22, 0
      %s321 = sadd.s32 %s320, %s318
      %s322 = scalar_lea.vmem %s3, %s321
      %s323 = smul.u32 4, %s21
      %p324 = scmp.lt.s32.totalorder %s20, 1
      %s325 = scalar_select %p324, %s20, 1
      %p326 = scmp.lt.s32.totalorder %s323, 3
      %s327 = scalar_select %p326, %s323, 3
      %s328 = smul.addr %s325, 4
      %s329 = sadd.s32 %s327, %s328
      %s330 = smul.addr %s329, 8
      %s331 = scalar_lea.vmem %s4, %s330
      %s332 = smul.u32 4, %s21
      %p333 = scmp.eq.s32.totalorder %s22, 0
      // Predicated region
      $region37: #{tpu_custom_call.1} parent=35 // pred_check
        %p334 = pneg %p333
      $region38: #{tpu_custom_call.1} parent=35 // pred_check_branch
        %336 = sbr.rel (%p334) target = $region40
      $region39: #{tpu_custom_call.1} parent=35 // pred_region
        %vm337 = vcmask 64512
        %338 = vst.msk [vmem:[#allocation2] sm:$0xff] %vm337, inf
        %339 = vst.msk [vmem:[#allocation2 + $0x8] sm:$0xff] %vm337, inf
        %340 = vst.msk [vmem:[#allocation2 + $0x10] sm:$0xff] %vm337, inf
        %341 = vst.msk [vmem:[#allocation2 + $0x18] sm:$0xff] %vm337, inf
        %342 = vst.msk [vmem:[#allocation3] sm:$0xff] %vm337, 0.0
        %343 = vst.msk [vmem:[#allocation3 + $0x8] sm:$0xff] %vm337, 0.0
        %344 = vst.msk [vmem:[#allocation3 + $0x10] sm:$0xff] %vm337, 0.0
        %345 = vst.msk [vmem:[#allocation3 + $0x18] sm:$0xff] %vm337, 0.0
      $region40: #{tpu_custom_call.1} parent=35 // pred_fallthru
        _
      %v346 = vld [vmem:[%s298] sm:$0xff]
      %v347 = vld [vmem:[%s298 + $0x8] sm:$0xff]
      %v348 = vld [vmem:[%s298 + $0x10] sm:$0xff]
      %v349 = vld [vmem:[%s298 + $0x18] sm:$0xff]
      %v350 = vld [vmem:[%s306] sm:$0x7]
      %v351 = vld [vmem:[%s315] sm:$0xff]
      %v352 = vld [vmem:[%s315 + $0x8] sm:$0xff]
      %v353 = vld [vmem:[%s315 + $0x10] sm:$0xff]
      %v354 = vld [vmem:[%s315 + $0x18] sm:$0xff]
      %v355 = vld [vmem:[%s322] sm:$0x1]
      %357 = vset.pattern.permute.xlu0 0
      %358 = vperm.xlu0 %357, %v351
      %v359 = vpop.permute.xlu0 %358
      %362 = vset.pattern.permute.xlu0 0
      %363 = vperm.xlu0 %362, %v352
      %v364 = vpop.permute.xlu0 %363
      %367 = vset.pattern.permute.xlu0 0
      %368 = vperm.xlu0 %367, %v353
      %v369 = vpop.permute.xlu0 %368
      %372 = vset.pattern.permute.xlu0 0
      %373 = vperm.xlu0 %372, %v354
      %v374 = vpop.permute.xlu0 %373
      %v377 = vlaneseq
      %v378 = vshrl.u32 %v377, 7
      %v379 = vsub.s32 0, %v378
      %v380 = vrot.slane %v355, %v379
      %v382 = vadd.f32 %v359, %v380
      %v383 = vadd.f32 %v364, %v380
      %v384 = vadd.f32 %v369, %v380
      %v385 = vadd.f32 %v374, %v380
      %vm386 = vcmask 23552
      %v388 = vsel %vm386, %v346, 0
      %v391 = vsel %vm386, %v347, 0
      %v394 = vsel %vm386, %v348, 0
      %v397 = vsel %vm386, %v349, 0
      %vm399 = vcmask 1042432
      %v401 = vsel %vm399, %v350, 0
      %403 = vmatprep.subr.mxu0 0.0
      %404 = vmatpush1.msra.mxu0 0.0
      %405 = vmatprep.subr.mxu0 0.0
      %406 = vmatpush1.msra.mxu0 0.0
      %407 = vmatprep.subr.mxu0 0.0
      %408 = vmatpush1.msra.mxu0 0.0
      %409 = vmatprep.subr.mxu0 0.0
      %410 = vmatpush1.msra.mxu0 0.0
      %411 = vmatprep.subr.mxu0 0.0
      %412 = vmatpush1.msra.mxu0 0.0
      %413 = vmatprep.subr.mxu0 0.0
      %414 = vmatpush1.msra.mxu0 0.0
      %415 = vmatprep.subr.mxu0 0.0
      %416 = vmatpush1.msra.mxu0 0.0
      %417 = vmatprep.subr.mxu0 0.0
      %418 = vmatpush1.msra.mxu0 0.0
      %419 = vmatprep.subr.mxu0 0.0
      %420 = vmatpush1.msra.mxu0 0.0
      %421 = vmatprep.subr.mxu0 0.0
      %422 = vmatpush1.msra.mxu0 0.0
      %423 = vmatprep.subr.mxu0 0.0
      %424 = vmatpush1.msra.mxu0 0.0
      %425 = vmatprep.subr.mxu0 0.0
      %426 = vmatpush1.msra.mxu0 0.0
      %427 = vmatprep.subr.mxu0 0.0
      %428 = vmatpush1.msra.mxu0 0.0
      %429 = vmatprep.subr.mxu0 0.0
      %430 = vmatpush1.msra.mxu0 0.0
      %431 = vmatprep.subr.mxu0 0.0
      %432 = vmatpush1.msra.mxu0 0.0
      %433 = vmatprep.subr.mxu0 0.0
      %434 = vmatpush1.msra.mxu0 %v401
      %435 = vmatprep.subr.mxu0 0.0
      %436 = vmatpush2.msra.mxu0 0.0
      %437 = vmatprep.subr.mxu0 0.0
      %438 = vmatpush2.msra.mxu0 0.0
      %439 = vmatprep.subr.mxu0 0.0
      %440 = vmatpush2.msra.mxu0 0.0
      %441 = vmatprep.subr.mxu0 0.0
      %442 = vmatpush2.msra.mxu0 0.0
      %443 = vmatprep.subr.mxu0 0.0
      %444 = vmatpush2.msra.mxu0 0.0
      %445 = vmatprep.subr.mxu0 0.0
      %446 = vmatpush2.msra.mxu0 0.0
      %447 = vmatprep.subr.mxu0 0.0
      %448 = vmatpush2.msra.mxu0 0.0
      %449 = vmatprep.subr.mxu0 0.0
      %450 = vmatpush2.msra.mxu0 0.0
      %451 = vmatprep.subr.mxu0 0.0
      %452 = vmatpush2.msra.mxu0 0.0
      %453 = vmatprep.subr.mxu0 0.0
      %454 = vmatpush2.msra.mxu0 0.0
      %455 = vmatprep.subr.mxu0 0.0
      %456 = vmatpush2.msra.mxu0 0.0
      %457 = vmatprep.subr.mxu0 0.0
      %458 = vmatpush2.msra.mxu0 0.0
      %459 = vmatprep.subr.mxu0 0.0
      %460 = vmatpush2.msra.mxu0 0.0
      %461 = vmatprep.subr.mxu0 0.0
      %462 = vmatpush2.msra.mxu0 0.0
      %463 = vmatprep.subr.mxu0 0.0
      %464 = vmatpush2.msra.mxu0 0.0
      %465 = vmatprep.subr.mxu0 0.0
      %466 = vmatpush2.msra.mxu0 0.0
      %467 = vmatprep.mubr.f32.mxu0 0.0
      %468 = vmatmul.mubr.f32.gmra.mxu0 %v388
      %v469 = vpop.f32.mrf.mxu0
      %v470 = vadd.f32 0.0, %v469
      %v471 = vpop.f32.mrf.mxu0
      %472 = vmatprep.mubr.f32.mxu0 0.0
      %473 = vmatmul.mubr.f32.gmra.mxu0 %v391
      %v474 = vpop.f32.mrf.mxu0
      %v475 = vadd.f32 0.0, %v474
      %v476 = vpop.f32.mrf.mxu0
      %477 = vmatprep.mubr.f32.mxu0 0.0
      %478 = vmatmul.mubr.f32.gmra.mxu0 %v394
      %v479 = vpop.f32.mrf.mxu0
      %v480 = vadd.f32 0.0, %v479
      %v481 = vpop.f32.mrf.mxu0
      %482 = vmatprep.mubr.f32.mxu0 0.0
      %483 = vmatmul.mubr.f32.gmra.mxu0 %v397
      %v484 = vpop.f32.mrf.mxu0
      %v485 = vadd.f32 0.0, %v484
      %v486 = vpop.f32.mrf.mxu0
      %487 = vdwg.mxu0
      %v488 = vmul.f32 %v470, 2.0
      %v489 = vmul.f32 %v475, 2.0
      %v490 = vmul.f32 %v480, 2.0
      %v491 = vmul.f32 %v485, 2.0
      %v492 = vsub.f32 %v382, %v488
      %v493 = vsub.f32 %v383, %v489
      %v494 = vsub.f32 %v384, %v490
      %v495 = vsub.f32 %v385, %v491
      %s496 = smul.u32 %s22, 32
      %v497 = vlaneseq
      %v498 = vand.u32 %v497, 127
      %v499 = vstv %s496
      %v500 = vadd.s32 %v499, %v498
      %v501 = vcvt.s32.f32 %v500
      %v502 = vcvt.s32.f32 %v498
      %v503 = vld [vmem:[#allocation2] sm:$0xff]
      %v504 = vld [vmem:[#allocation2 + $0x8] sm:$0xff]
      %v505 = vld [vmem:[#allocation2 + $0x10] sm:$0xff]
      %v506 = vld [vmem:[#allocation2 + $0x18] sm:$0xff]
      %v507 = vld [vmem:[#allocation3] sm:$0xff]
      %v508 = vld [vmem:[#allocation3 + $0x8] sm:$0xff]
      %v509 = vld [vmem:[#allocation3 + $0x10] sm:$0xff]
      %v510 = vld [vmem:[#allocation3 + $0x18] sm:$0xff]
      %vm511 = vcmask 261120
      %v512 = vsel %vm511, %v492, inf
      %513 = vmin.xlane.f32.xlu0 %v512
      %v514 = vpop.xlane.xlu0 %513
      %v515 = vsel %vm511, %v493, inf
      %516 = vmin.xlane.f32.xlu0 %v515
      %v517 = vpop.xlane.xlu0 %516
      %v518 = vsel %vm511, %v494, inf
      %519 = vmin.xlane.f32.xlu0 %v518
      %v520 = vpop.xlane.xlu0 %519
      %v521 = vsel %vm511, %v495, inf
      %522 = vmin.xlane.f32.xlu0 %v521
      %v523 = vpop.xlane.xlu0 %522
      %vm524 = vcmp.eq.f32.partialorder %v492, %v514
      %vm525 = vcmp.eq.f32.partialorder %v493, %v517
      %vm526 = vcmp.eq.f32.partialorder %v494, %v520
      %vm527 = vcmp.eq.f32.partialorder %v495, %v523
      %v528 = vsel %vm524, %v501, 3e+38
      %v529 = vsel %vm525, %v501, 3e+38
      %v530 = vsel %vm526, %v501, 3e+38
      %v531 = vsel %vm527, %v501, 3e+38
      %v532 = vsel %vm511, %v528, inf
      %533 = vmin.xlane.f32.xlu0 %v532
      %v534 = vpop.xlane.xlu0 %533
      %v535 = vsel %vm511, %v529, inf
      %536 = vmin.xlane.f32.xlu0 %v535
      %v537 = vpop.xlane.xlu0 %536
      %v538 = vsel %vm511, %v530, inf
      %539 = vmin.xlane.f32.xlu0 %v538
      %v540 = vpop.xlane.xlu0 %539
      %v541 = vsel %vm511, %v531, inf
      %542 = vmin.xlane.f32.xlu0 %v541
      %v543 = vpop.xlane.xlu0 %542
      %vm544 = vcmask 64512
      %v545 = vsel %vm544, %v503, inf
      %546 = vmin.xlane.f32.xlu0 %v545
      %v547 = vpop.xlane.xlu0 %546
      %v548 = vsel %vm544, %v504, inf
      %549 = vmin.xlane.f32.xlu0 %v548
      %v550 = vpop.xlane.xlu0 %549
      %v551 = vsel %vm544, %v505, inf
      %552 = vmin.xlane.f32.xlu0 %v551
      %v553 = vpop.xlane.xlu0 %552
      %v554 = vsel %vm544, %v506, inf
      %555 = vmin.xlane.f32.xlu0 %v554
      %v556 = vpop.xlane.xlu0 %555
      %vm557 = vcmp.eq.f32.partialorder %v503, %v547
      %vm558 = vcmp.eq.f32.partialorder %v504, %v550
      %vm559 = vcmp.eq.f32.partialorder %v505, %v553
      %vm560 = vcmp.eq.f32.partialorder %v506, %v556
      %v561 = vsel %vm557, %v502, 3e+38
      %v562 = vsel %vm558, %v502, 3e+38
      %v563 = vsel %vm559, %v502, 3e+38
      %v564 = vsel %vm560, %v502, 3e+38
      %v565 = vsel %vm544, %v561, inf
      %566 = vmin.xlane.f32.xlu0 %v565
      %v567 = vpop.xlane.xlu0 %566
      %v568 = vsel %vm544, %v562, inf
      %569 = vmin.xlane.f32.xlu0 %v568
      %v570 = vpop.xlane.xlu0 %569
      %v571 = vsel %vm544, %v563, inf
      %572 = vmin.xlane.f32.xlu0 %v571
      %v573 = vpop.xlane.xlu0 %572
      %v574 = vsel %vm544, %v564, inf
      %575 = vmin.xlane.f32.xlu0 %v574
      %v576 = vpop.xlane.xlu0 %575
      %vm577 = vcmp.eq.f32.partialorder %v502, %v567
      %vm578 = vcmp.eq.f32.partialorder %v502, %v570
      %vm579 = vcmp.eq.f32.partialorder %v502, %v573
      %vm580 = vcmp.eq.f32.partialorder %v502, %v576
      %v581 = vsel %vm577, %v507, 3e+38
      %v582 = vsel %vm578, %v508, 3e+38
      %v583 = vsel %vm579, %v509, 3e+38
      %v584 = vsel %vm580, %v510, 3e+38
      %v585 = vsel %vm544, %v581, inf
      %586 = vmin.xlane.f32.xlu0 %v585
      %v587 = vpop.xlane.xlu0 %586
      %v588 = vsel %vm544, %v582, inf
      %589 = vmin.xlane.f32.xlu0 %v588
      %v590 = vpop.xlane.xlu0 %589
      %v591 = vsel %vm544, %v583, inf
      %592 = vmin.xlane.f32.xlu0 %v591
      %v593 = vpop.xlane.xlu0 %592
      %v594 = vsel %vm544, %v584, inf
      %595 = vmin.xlane.f32.xlu0 %v594
      %v596 = vpop.xlane.xlu0 %595
      %vm597 = vcmp.lt.f32.partialorder %v514, %v547
      %vm598 = vcmp.lt.f32.partialorder %v517, %v550
      %vm599 = vcmp.lt.f32.partialorder %v520, %v553
      %vm600 = vcmp.lt.f32.partialorder %v523, %v556
      %v601 = vsel %vm597, %v514, %v547
      %v602 = vsel %vm598, %v517, %v550
      %v603 = vsel %vm599, %v520, %v553
      %v604 = vsel %vm600, %v523, %v556
      %v605 = vsel %vm597, %v534, %v587
      %v606 = vsel %vm598, %v537, %v590
      %v607 = vsel %vm599, %v540, %v593
      %v608 = vsel %vm600, %v543, %v596
      %vm609 = vcmp.eq.f32.partialorder %v502, 0.0
      %v610 = vsel %vm609, %v601, 0.0
      %v611 = vsel %vm609, %v602, 0.0
      %v612 = vsel %vm609, %v603, 0.0
      %v613 = vsel %vm609, %v604, 0.0
      %v614 = vsel %vm609, %v605, 0.0
      %v615 = vsel %vm609, %v606, 0.0
      %v616 = vsel %vm609, %v607, 0.0
      %v617 = vsel %vm609, %v608, 0.0
      %vm618 = vcmp.eq.f32.partialorder %v501, %v534
      %vm619 = vcmp.eq.f32.partialorder %v501, %v537
      %vm620 = vcmp.eq.f32.partialorder %v501, %v540
      %vm621 = vcmp.eq.f32.partialorder %v501, %v543
      %v622 = vsel %vm597, 1, 0
      %v623 = vsel %vm598, 1, 0
      %v624 = vsel %vm599, 1, 0
      %v625 = vsel %vm600, 1, 0
      %vm626 = vcmp.eq.s32.totalorder %v622, 1
      %vm627 = vcmp.eq.s32.totalorder %v623, 1
      %vm628 = vcmp.eq.s32.totalorder %v624, 1
      %vm629 = vcmp.eq.s32.totalorder %v625, 1
      %vm630 = vmand %vm626, %vm618
      %vm631 = vmand %vm627, %vm619
      %vm632 = vmand %vm628, %vm620
      %vm633 = vmand %vm629, %vm621
      %v634 = vsel %vm630, inf, %v492
      %v635 = vsel %vm631, inf, %v493
      %v636 = vsel %vm632, inf, %v494
      %v637 = vsel %vm633, inf, %v495
      %vm638 = vmxor %vm597, 1
      %vm639 = vmxor %vm598, 1
      %vm640 = vmxor %vm599, 1
      %vm641 = vmxor %vm600, 1
      %v642 = vsel %vm638, 1, 0
      %v643 = vsel %vm639, 1, 0
      %v644 = vsel %vm640, 1, 0
      %v645 = vsel %vm641, 1, 0
      %vm646 = vcmp.eq.s32.totalorder %v642, 1
      %vm647 = vcmp.eq.s32.totalorder %v643, 1
      %vm648 = vcmp.eq.s32.totalorder %v644, 1
      %vm649 = vcmp.eq.s32.totalorder %v645, 1
      %vm650 = vmand %vm646, %vm577
      %vm651 = vmand %vm647, %vm578
      %vm652 = vmand %vm648, %vm579
      %vm653 = vmand %vm649, %vm580
      %v654 = vsel %vm650, inf, %v503
      %v655 = vsel %vm651, inf, %v504
      %v656 = vsel %vm652, inf, %v505
      %v657 = vsel %vm653, inf, %v506
      %v658 = vsel %vm511, %v634, inf
      %659 = vmin.xlane.f32.xlu0 %v658
      %v660 = vpop.xlane.xlu0 %659
      %v661 = vsel %vm511, %v635, inf
      %662 = vmin.xlane.f32.xlu0 %v661
      %v663 = vpop.xlane.xlu0 %662
      %v664 = vsel %vm511, %v636, inf
      %665 = vmin.xlane.f32.xlu0 %v664
      %v666 = vpop.xlane.xlu0 %665
      %v667 = vsel %vm511, %v637, inf
      %668 = vmin.xlane.f32.xlu0 %v667
      %v669 = vpop.xlane.xlu0 %668
      %vm670 = vcmp.eq.f32.partialorder %v634, %v660
      %vm671 = vcmp.eq.f32.partialorder %v635, %v663
      %vm672 = vcmp.eq.f32.partialorder %v636, %v666
      %vm673 = vcmp.eq.f32.partialorder %v637, %v669
      %v674 = vsel %vm670, %v501, 3e+38
      %v675 = vsel %vm671, %v501, 3e+38
      %v676 = vsel %vm672, %v501, 3e+38
      %v677 = vsel %vm673, %v501, 3e+38
      %v678 = vsel %vm511, %v674, inf
      %679 = vmin.xlane.f32.xlu0 %v678
      %v680 = vpop.xlane.xlu0 %679
      %v681 = vsel %vm511, %v675, inf
      %682 = vmin.xlane.f32.xlu0 %v681
      %v683 = vpop.xlane.xlu0 %682
      %v684 = vsel %vm511, %v676, inf
      %685 = vmin.xlane.f32.xlu0 %v684
      %v686 = vpop.xlane.xlu0 %685
      %v687 = vsel %vm511, %v677, inf
      %688 = vmin.xlane.f32.xlu0 %v687
      %v689 = vpop.xlane.xlu0 %688
      %v690 = vsel %vm544, %v654, inf
      %691 = vmin.xlane.f32.xlu0 %v690
      %v692 = vpop.xlane.xlu0 %691
      %v693 = vsel %vm544, %v655, inf
      %694 = vmin.xlane.f32.xlu0 %v693
      %v695 = vpop.xlane.xlu0 %694
      %v696 = vsel %vm544, %v656, inf
      %697 = vmin.xlane.f32.xlu0 %v696
      %v698 = vpop.xlane.xlu0 %697
      %v699 = vsel %vm544, %v657, inf
      %700 = vmin.xlane.f32.xlu0 %v699
      %v701 = vpop.xlane.xlu0 %700
      %vm702 = vcmp.eq.f32.partialorder %v654, %v692
      %vm703 = vcmp.eq.f32.partialorder %v655, %v695
      %vm704 = vcmp.eq.f32.partialorder %v656, %v698
      %vm705 = vcmp.eq.f32.partialorder %v657, %v701
      %v706 = vsel %vm702, %v502, 3e+38
      %v707 = vsel %vm703, %v502, 3e+38
      %v708 = vsel %vm704, %v502, 3e+38
      %v709 = vsel %vm705, %v502, 3e+38
      %v710 = vsel %vm544, %v706, inf
      %711 = vmin.xlane.f32.xlu0 %v710
      %v712 = vpop.xlane.xlu0 %711
      %v713 = vsel %vm544, %v707, inf
      %714 = vmin.xlane.f32.xlu0 %v713
      %v715 = vpop.xlane.xlu0 %714
      %v716 = vsel %vm544, %v708, inf
      %717 = vmin.xlane.f32.xlu0 %v716
      %v718 = vpop.xlane.xlu0 %717
      %v719 = vsel %vm544, %v709, inf
      %720 = vmin.xlane.f32.xlu0 %v719
      %v721 = vpop.xlane.xlu0 %720
      %vm722 = vcmp.eq.f32.partialorder %v502, %v712
      %vm723 = vcmp.eq.f32.partialorder %v502, %v715
      %vm724 = vcmp.eq.f32.partialorder %v502, %v718
      %vm725 = vcmp.eq.f32.partialorder %v502, %v721
      %v726 = vsel %vm722, %v507, 3e+38
      %v727 = vsel %vm723, %v508, 3e+38
      %v728 = vsel %vm724, %v509, 3e+38
      %v729 = vsel %vm725, %v510, 3e+38
      %v730 = vsel %vm544, %v726, inf
      %731 = vmin.xlane.f32.xlu0 %v730
      %v732 = vpop.xlane.xlu0 %731
      %v733 = vsel %vm544, %v727, inf
      %734 = vmin.xlane.f32.xlu0 %v733
      %v735 = vpop.xlane.xlu0 %734
      %v736 = vsel %vm544, %v728, inf
      %737 = vmin.xlane.f32.xlu0 %v736
      %v738 = vpop.xlane.xlu0 %737
      %v739 = vsel %vm544, %v729, inf
      %740 = vmin.xlane.f32.xlu0 %v739
      %v741 = vpop.xlane.xlu0 %740
      %vm742 = vcmp.lt.f32.partialorder %v660, %v692
      %vm743 = vcmp.lt.f32.partialorder %v663, %v695
      %vm744 = vcmp.lt.f32.partialorder %v666, %v698
      %vm745 = vcmp.lt.f32.partialorder %v669, %v701
      %v746 = vsel %vm742, %v660, %v692
      %v747 = vsel %vm743, %v663, %v695
      %v748 = vsel %vm744, %v666, %v698
      %v749 = vsel %vm745, %v669, %v701
      %v750 = vsel %vm742, %v680, %v732
      %v751 = vsel %vm743, %v683, %v735
      %v752 = vsel %vm744, %v686, %v738
      %v753 = vsel %vm745, %v689, %v741
      %vm754 = vcmp.eq.f32.partialorder %v502, 1.0
      %v755 = vsel %vm754, %v746, %v610
      %v756 = vsel %vm754, %v747, %v611
      %v757 = vsel %vm754, %v748, %v612
      %v758 = vsel %vm754, %v749, %v613
      %v759 = vsel %vm754, %v750, %v614
      %v760 = vsel %vm754, %v751, %v615
      %v761 = vsel %vm754, %v752, %v616
      %v762 = vsel %vm754, %v753, %v617
      %vm763 = vcmp.eq.f32.partialorder %v501, %v680
      %vm764 = vcmp.eq.f32.partialorder %v501, %v683
      %vm765 = vcmp.eq.f32.partialorder %v501, %v686
      %vm766 = vcmp.eq.f32.partialorder %v501, %v689
      %v767 = vsel %vm742, 1, 0
      %v768 = vsel %vm743, 1, 0
      %v769 = vsel %vm744, 1, 0
      %v770 = vsel %vm745, 1, 0
      %vm771 = vcmp.eq.s32.totalorder %v767, 1
      %vm772 = vcmp.eq.s32.totalorder %v768, 1
      %vm773 = vcmp.eq.s32.totalorder %v769, 1
      %vm774 = vcmp.eq.s32.totalorder %v770, 1
      %vm775 = vmand %vm771, %vm763
      %vm776 = vmand %vm772, %vm764
      %vm777 = vmand %vm773, %vm765
      %vm778 = vmand %vm774, %vm766
      %v779 = vsel %vm775, inf, %v634
      %v780 = vsel %vm776, inf, %v635
      %v781 = vsel %vm777, inf, %v636
      %v782 = vsel %vm778, inf, %v637
      %vm783 = vmxor %vm742, 1
      %vm784 = vmxor %vm743, 1
      %vm785 = vmxor %vm744, 1
      %vm786 = vmxor %vm745, 1
      %v787 = vsel %vm783, 1, 0
      %v788 = vsel %vm784, 1, 0
      %v789 = vsel %vm785, 1, 0
      %v790 = vsel %vm786, 1, 0
      %vm791 = vcmp.eq.s32.totalorder %v787, 1
      %vm792 = vcmp.eq.s32.totalorder %v788, 1
      %vm793 = vcmp.eq.s32.totalorder %v789, 1
      %vm794 = vcmp.eq.s32.totalorder %v790, 1
      %vm795 = vmand %vm791, %vm722
      %vm796 = vmand %vm792, %vm723
      %vm797 = vmand %vm793, %vm724
      %vm798 = vmand %vm794, %vm725
      %v799 = vsel %vm795, inf, %v654
      %v800 = vsel %vm796, inf, %v655
      %v801 = vsel %vm797, inf, %v656
      %v802 = vsel %vm798, inf, %v657
      %v803 = vsel %vm511, %v779, inf
      %804 = vmin.xlane.f32.xlu0 %v803
      %v805 = vpop.xlane.xlu0 %804
      %v806 = vsel %vm511, %v780, inf
      %807 = vmin.xlane.f32.xlu0 %v806
      %v808 = vpop.xlane.xlu0 %807
      %v809 = vsel %vm511, %v781, inf
      %810 = vmin.xlane.f32.xlu0 %v809
      %v811 = vpop.xlane.xlu0 %810
      %v812 = vsel %vm511, %v782, inf
      %813 = vmin.xlane.f32.xlu0 %v812
      %v814 = vpop.xlane.xlu0 %813
      %vm815 = vcmp.eq.f32.partialorder %v779, %v805
      %vm816 = vcmp.eq.f32.partialorder %v780, %v808
      %vm817 = vcmp.eq.f32.partialorder %v781, %v811
      %vm818 = vcmp.eq.f32.partialorder %v782, %v814
      %v819 = vsel %vm815, %v501, 3e+38
      %v820 = vsel %vm816, %v501, 3e+38
      %v821 = vsel %vm817, %v501, 3e+38
      %v822 = vsel %vm818, %v501, 3e+38
      %v823 = vsel %vm511, %v819, inf
      %824 = vmin.xlane.f32.xlu0 %v823
      %v825 = vpop.xlane.xlu0 %824
      %v826 = vsel %vm511, %v820, inf
      %827 = vmin.xlane.f32.xlu0 %v826
      %v828 = vpop.xlane.xlu0 %827
      %v829 = vsel %vm511, %v821, inf
      %830 = vmin.xlane.f32.xlu0 %v829
      %v831 = vpop.xlane.xlu0 %830
      %v832 = vsel %vm511, %v822, inf
      %833 = vmin.xlane.f32.xlu0 %v832
      %v834 = vpop.xlane.xlu0 %833
      %v835 = vsel %vm544, %v799, inf
      %836 = vmin.xlane.f32.xlu0 %v835
      %v837 = vpop.xlane.xlu0 %836
      %v838 = vsel %vm544, %v800, inf
      %839 = vmin.xlane.f32.xlu0 %v838
      %v840 = vpop.xlane.xlu0 %839
      %v841 = vsel %vm544, %v801, inf
      %842 = vmin.xlane.f32.xlu0 %v841
      %v843 = vpop.xlane.xlu0 %842
      %v844 = vsel %vm544, %v802, inf
      %845 = vmin.xlane.f32.xlu0 %v844
      %v846 = vpop.xlane.xlu0 %845
      %vm847 = vcmp.eq.f32.partialorder %v799, %v837
      %vm848 = vcmp.eq.f32.partialorder %v800, %v840
      %vm849 = vcmp.eq.f32.partialorder %v801, %v843
      %vm850 = vcmp.eq.f32.partialorder %v802, %v846
      %v851 = vsel %vm847, %v502, 3e+38
      %v852 = vsel %vm848, %v502, 3e+38
      %v853 = vsel %vm849, %v502, 3e+38
      %v854 = vsel %vm850, %v502, 3e+38
      %v855 = vsel %vm544, %v851, inf
      %856 = vmin.xlane.f32.xlu0 %v855
      %v857 = vpop.xlane.xlu0 %856
      %v858 = vsel %vm544, %v852, inf
      %859 = vmin.xlane.f32.xlu0 %v858
      %v860 = vpop.xlane.xlu0 %859
      %v861 = vsel %vm544, %v853, inf
      %862 = vmin.xlane.f32.xlu0 %v861
      %v863 = vpop.xlane.xlu0 %862
      %v864 = vsel %vm544, %v854, inf
      %865 = vmin.xlane.f32.xlu0 %v864
      %v866 = vpop.xlane.xlu0 %865
      %vm867 = vcmp.eq.f32.partialorder %v502, %v857
      %vm868 = vcmp.eq.f32.partialorder %v502, %v860
      %vm869 = vcmp.eq.f32.partialorder %v502, %v863
      %vm870 = vcmp.eq.f32.partialorder %v502, %v866
      %v871 = vsel %vm867, %v507, 3e+38
      %v872 = vsel %vm868, %v508, 3e+38
      %v873 = vsel %vm869, %v509, 3e+38
      %v874 = vsel %vm870, %v510, 3e+38
      %v875 = vsel %vm544, %v871, inf
      %876 = vmin.xlane.f32.xlu0 %v875
      %v877 = vpop.xlane.xlu0 %876
      %v878 = vsel %vm544, %v872, inf
      %879 = vmin.xlane.f32.xlu0 %v878
      %v880 = vpop.xlane.xlu0 %879
      %v881 = vsel %vm544, %v873, inf
      %882 = vmin.xlane.f32.xlu0 %v881
      %v883 = vpop.xlane.xlu0 %882
      %v884 = vsel %vm544, %v874, inf
      %885 = vmin.xlane.f32.xlu0 %v884
      %v886 = vpop.xlane.xlu0 %885
      %vm887 = vcmp.lt.f32.partialorder %v805, %v837
      %vm888 = vcmp.lt.f32.partialorder %v808, %v840
      %vm889 = vcmp.lt.f32.partialorder %v811, %v843
      %vm890 = vcmp.lt.f32.partialorder %v814, %v846
      %v891 = vsel %vm887, %v805, %v837
      %v892 = vsel %vm888, %v808, %v840
      %v893 = vsel %vm889, %v811, %v843
      %v894 = vsel %vm890, %v814, %v846
      %v895 = vsel %vm887, %v825, %v877
      %v896 = vsel %vm888, %v828, %v880
      %v897 = vsel %vm889, %v831, %v883
      %v898 = vsel %vm890, %v834, %v886
      %vm899 = vcmp.eq.f32.partialorder %v502, 2.0
      %v900 = vsel %vm899, %v891, %v755
      %v901 = vsel %vm899, %v892, %v756
      %v902 = vsel %vm899, %v893, %v757
      %v903 = vsel %vm899, %v894, %v758
      %v904 = vsel %vm899, %v895, %v759
      %v905 = vsel %vm899, %v896, %v760
      %v906 = vsel %vm899, %v897, %v761
      %v907 = vsel %vm899, %v898, %v762
      %vm908 = vcmp.eq.f32.partialorder %v501, %v825
      %vm909 = vcmp.eq.f32.partialorder %v501, %v828
      %vm910 = vcmp.eq.f32.partialorder %v501, %v831
      %vm911 = vcmp.eq.f32.partialorder %v501, %v834
      %v912 = vsel %vm887, 1, 0
      %v913 = vsel %vm888, 1, 0
      %v914 = vsel %vm889, 1, 0
      %v915 = vsel %vm890, 1, 0
      %vm916 = vcmp.eq.s32.totalorder %v912, 1
      %vm917 = vcmp.eq.s32.totalorder %v913, 1
      %vm918 = vcmp.eq.s32.totalorder %v914, 1
      %vm919 = vcmp.eq.s32.totalorder %v915, 1
      %vm920 = vmand %vm916, %vm908
      %vm921 = vmand %vm917, %vm909
      %vm922 = vmand %vm918, %vm910
      %vm923 = vmand %vm919, %vm911
      %v924 = vsel %vm920, inf, %v779
      %v925 = vsel %vm921, inf, %v780
      %v926 = vsel %vm922, inf, %v781
      %v927 = vsel %vm923, inf, %v782
      %vm928 = vmxor %vm887, 1
      %vm929 = vmxor %vm888, 1
      %vm930 = vmxor %vm889, 1
      %vm931 = vmxor %vm890, 1
      %v932 = vsel %vm928, 1, 0
      %v933 = vsel %vm929, 1, 0
      %v934 = vsel %vm930, 1, 0
      %v935 = vsel %vm931, 1, 0
      %vm936 = vcmp.eq.s32.totalorder %v932, 1
      %vm937 = vcmp.eq.s32.totalorder %v933, 1
      %vm938 = vcmp.eq.s32.totalorder %v934, 1
      %vm939 = vcmp.eq.s32.totalorder %v935, 1
      %vm940 = vmand %vm936, %vm867
      %vm941 = vmand %vm937, %vm868
      %vm942 = vmand %vm938, %vm869
      %vm943 = vmand %vm939, %vm870
      %v944 = vsel %vm940, inf, %v799
      %v945 = vsel %vm941, inf, %v800
      %v946 = vsel %vm942, inf, %v801
      %v947 = vsel %vm943, inf, %v802
      %v948 = vsel %vm511, %v924, inf
      %949 = vmin.xlane.f32.xlu0 %v948
      %v950 = vpop.xlane.xlu0 %949
      %v951 = vsel %vm511, %v925, inf
      %952 = vmin.xlane.f32.xlu0 %v951
      %v953 = vpop.xlane.xlu0 %952
      %v954 = vsel %vm511, %v926, inf
      %955 = vmin.xlane.f32.xlu0 %v954
      %v956 = vpop.xlane.xlu0 %955
      %v957 = vsel %vm511, %v927, inf
      %958 = vmin.xlane.f32.xlu0 %v957
      %v959 = vpop.xlane.xlu0 %958
      %vm960 = vcmp.eq.f32.partialorder %v924, %v950
      %vm961 = vcmp.eq.f32.partialorder %v925, %v953
      %vm962 = vcmp.eq.f32.partialorder %v926, %v956
      %vm963 = vcmp.eq.f32.partialorder %v927, %v959
      %v964 = vsel %vm960, %v501, 3e+38
      %v965 = vsel %vm961, %v501, 3e+38
      %v966 = vsel %vm962, %v501, 3e+38
      %v967 = vsel %vm963, %v501, 3e+38
      %v968 = vsel %vm511, %v964, inf
      %969 = vmin.xlane.f32.xlu0 %v968
      %v970 = vpop.xlane.xlu0 %969
      %v971 = vsel %vm511, %v965, inf
      %972 = vmin.xlane.f32.xlu0 %v971
      %v973 = vpop.xlane.xlu0 %972
      %v974 = vsel %vm511, %v966, inf
      %975 = vmin.xlane.f32.xlu0 %v974
      %v976 = vpop.xlane.xlu0 %975
      %v977 = vsel %vm511, %v967, inf
      %978 = vmin.xlane.f32.xlu0 %v977
      %v979 = vpop.xlane.xlu0 %978
      %v980 = vsel %vm544, %v944, inf
      %981 = vmin.xlane.f32.xlu0 %v980
      %v982 = vpop.xlane.xlu0 %981
      %v983 = vsel %vm544, %v945, inf
      %984 = vmin.xlane.f32.xlu0 %v983
      %v985 = vpop.xlane.xlu0 %984
      %v986 = vsel %vm544, %v946, inf
      %987 = vmin.xlane.f32.xlu0 %v986
      %v988 = vpop.xlane.xlu0 %987
      %v989 = vsel %vm544, %v947, inf
      %990 = vmin.xlane.f32.xlu0 %v989
      %v991 = vpop.xlane.xlu0 %990
      %vm992 = vcmp.eq.f32.partialorder %v944, %v982
      %vm993 = vcmp.eq.f32.partialorder %v945, %v985
      %vm994 = vcmp.eq.f32.partialorder %v946, %v988
      %vm995 = vcmp.eq.f32.partialorder %v947, %v991
      %v996 = vsel %vm992, %v502, 3e+38
      %v997 = vsel %vm993, %v502, 3e+38
      %v998 = vsel %vm994, %v502, 3e+38
      %v999 = vsel %vm995, %v502, 3e+38
      %v1000 = vsel %vm544, %v996, inf
      %1001 = vmin.xlane.f32.xlu0 %v1000
      %v1002 = vpop.xlane.xlu0 %1001
      %v1003 = vsel %vm544, %v997, inf
      %1004 = vmin.xlane.f32.xlu0 %v1003
      %v1005 = vpop.xlane.xlu0 %1004
      %v1006 = vsel %vm544, %v998, inf
      %1007 = vmin.xlane.f32.xlu0 %v1006
      %v1008 = vpop.xlane.xlu0 %1007
      %v1009 = vsel %vm544, %v999, inf
      %1010 = vmin.xlane.f32.xlu0 %v1009
      %v1011 = vpop.xlane.xlu0 %1010
      %vm1012 = vcmp.eq.f32.partialorder %v502, %v1002
      %vm1013 = vcmp.eq.f32.partialorder %v502, %v1005
      %vm1014 = vcmp.eq.f32.partialorder %v502, %v1008
      %vm1015 = vcmp.eq.f32.partialorder %v502, %v1011
      %v1016 = vsel %vm1012, %v507, 3e+38
      %v1017 = vsel %vm1013, %v508, 3e+38
      %v1018 = vsel %vm1014, %v509, 3e+38
      %v1019 = vsel %vm1015, %v510, 3e+38
      %v1020 = vsel %vm544, %v1016, inf
      %1021 = vmin.xlane.f32.xlu0 %v1020
      %v1022 = vpop.xlane.xlu0 %1021
      %v1023 = vsel %vm544, %v1017, inf
      %1024 = vmin.xlane.f32.xlu0 %v1023
      %v1025 = vpop.xlane.xlu0 %1024
      %v1026 = vsel %vm544, %v1018, inf
      %1027 = vmin.xlane.f32.xlu0 %v1026
      %v1028 = vpop.xlane.xlu0 %1027
      %v1029 = vsel %vm544, %v1019, inf
      %1030 = vmin.xlane.f32.xlu0 %v1029
      %v1031 = vpop.xlane.xlu0 %1030
      %vm1032 = vcmp.lt.f32.partialorder %v950, %v982
      %vm1033 = vcmp.lt.f32.partialorder %v953, %v985
      %vm1034 = vcmp.lt.f32.partialorder %v956, %v988
      %vm1035 = vcmp.lt.f32.partialorder %v959, %v991
      %v1036 = vsel %vm1032, %v950, %v982
      %v1037 = vsel %vm1033, %v953, %v985
      %v1038 = vsel %vm1034, %v956, %v988
      %v1039 = vsel %vm1035, %v959, %v991
      %v1040 = vsel %vm1032, %v970, %v1022
      %v1041 = vsel %vm1033, %v973, %v1025
      %v1042 = vsel %vm1034, %v976, %v1028
      %v1043 = vsel %vm1035, %v979, %v1031
      %vm1044 = vcmp.eq.f32.partialorder %v502, 3.0
      %v1045 = vsel %vm1044, %v1036, %v900
      %v1046 = vsel %vm1044, %v1037, %v901
      %v1047 = vsel %vm1044, %v1038, %v902
      %v1048 = vsel %vm1044, %v1039, %v903
      %v1049 = vsel %vm1044, %v1040, %v904
      %v1050 = vsel %vm1044, %v1041, %v905
      %v1051 = vsel %vm1044, %v1042, %v906
      %v1052 = vsel %vm1044, %v1043, %v907
      %vm1053 = vcmp.eq.f32.partialorder %v501, %v970
      %vm1054 = vcmp.eq.f32.partialorder %v501, %v973
      %vm1055 = vcmp.eq.f32.partialorder %v501, %v976
      %vm1056 = vcmp.eq.f32.partialorder %v501, %v979
      %v1057 = vsel %vm1032, 1, 0
      %v1058 = vsel %vm1033, 1, 0
      %v1059 = vsel %vm1034, 1, 0
      %v1060 = vsel %vm1035, 1, 0
      %vm1061 = vcmp.eq.s32.totalorder %v1057, 1
      %vm1062 = vcmp.eq.s32.totalorder %v1058, 1
      %vm1063 = vcmp.eq.s32.totalorder %v1059, 1
      %vm1064 = vcmp.eq.s32.totalorder %v1060, 1
      %vm1065 = vmand %vm1061, %vm1053
      %vm1066 = vmand %vm1062, %vm1054
      %vm1067 = vmand %vm1063, %vm1055
      %vm1068 = vmand %vm1064, %vm1056
      %v1069 = vsel %vm1065, inf, %v924
      %v1070 = vsel %vm1066, inf, %v925
      %v1071 = vsel %vm1067, inf, %v926
      %v1072 = vsel %vm1068, inf, %v927
      %vm1073 = vmxor %vm1032, 1
      %vm1074 = vmxor %vm1033, 1
      %vm1075 = vmxor %vm1034, 1
      %vm1076 = vmxor %vm1035, 1
      %v1077 = vsel %vm1073, 1, 0
      %v1078 = vsel %vm1074, 1, 0
      %v1079 = vsel %vm1075, 1, 0
      %v1080 = vsel %vm1076, 1, 0
      %vm1081 = vcmp.eq.s32.totalorder %v1077, 1
      %vm1082 = vcmp.eq.s32.totalorder %v1078, 1
      %vm1083 = vcmp.eq.s32.totalorder %v1079, 1
      %vm1084 = vcmp.eq.s32.totalorder %v1080, 1
      %vm1085 = vmand %vm1081, %vm1012
      %vm1086 = vmand %vm1082, %vm1013
      %vm1087 = vmand %vm1083, %vm1014
      %vm1088 = vmand %vm1084, %vm1015
      %v1089 = vsel %vm1085, inf, %v944
      %v1090 = vsel %vm1086, inf, %v945
      %v1091 = vsel %vm1087, inf, %v946
      %v1092 = vsel %vm1088, inf, %v947
      %v1093 = vsel %vm511, %v1069, inf
      %1094 = vmin.xlane.f32.xlu0 %v1093
      %v1095 = vpop.xlane.xlu0 %1094
      %v1096 = vsel %vm511, %v1070, inf
      %1097 = vmin.xlane.f32.xlu0 %v1096
      %v1098 = vpop.xlane.xlu0 %1097
      %v1099 = vsel %vm511, %v1071, inf
      %1100 = vmin.xlane.f32.xlu0 %v1099
      %v1101 = vpop.xlane.xlu0 %1100
      %v1102 = vsel %vm511, %v1072, inf
      %1103 = vmin.xlane.f32.xlu0 %v1102
      %v1104 = vpop.xlane.xlu0 %1103
      %vm1105 = vcmp.eq.f32.partialorder %v1069, %v1095
      %vm1106 = vcmp.eq.f32.partialorder %v1070, %v1098
      %vm1107 = vcmp.eq.f32.partialorder %v1071, %v1101
      %vm1108 = vcmp.eq.f32.partialorder %v1072, %v1104
      %v1109 = vsel %vm1105, %v501, 3e+38
      %v1110 = vsel %vm1106, %v501, 3e+38
      %v1111 = vsel %vm1107, %v501, 3e+38
      %v1112 = vsel %vm1108, %v501, 3e+38
      %v1113 = vsel %vm511, %v1109, inf
      %1114 = vmin.xlane.f32.xlu0 %v1113
      %v1115 = vpop.xlane.xlu0 %1114
      %v1116 = vsel %vm511, %v1110, inf
      %1117 = vmin.xlane.f32.xlu0 %v1116
      %v1118 = vpop.xlane.xlu0 %1117
      %v1119 = vsel %vm511, %v1111, inf
      %1120 = vmin.xlane.f32.xlu0 %v1119
      %v1121 = vpop.xlane.xlu0 %1120
      %v1122 = vsel %vm511, %v1112, inf
      %1123 = vmin.xlane.f32.xlu0 %v1122
      %v1124 = vpop.xlane.xlu0 %1123
      %v1125 = vsel %vm544, %v1089, inf
      %1126 = vmin.xlane.f32.xlu0 %v1125
      %v1127 = vpop.xlane.xlu0 %1126
      %v1128 = vsel %vm544, %v1090, inf
      %1129 = vmin.xlane.f32.xlu0 %v1128
      %v1130 = vpop.xlane.xlu0 %1129
      %v1131 = vsel %vm544, %v1091, inf
      %1132 = vmin.xlane.f32.xlu0 %v1131
      %v1133 = vpop.xlane.xlu0 %1132
      %v1134 = vsel %vm544, %v1092, inf
      %1135 = vmin.xlane.f32.xlu0 %v1134
      %v1136 = vpop.xlane.xlu0 %1135
      %vm1137 = vcmp.eq.f32.partialorder %v1089, %v1127
      %vm1138 = vcmp.eq.f32.partialorder %v1090, %v1130
      %vm1139 = vcmp.eq.f32.partialorder %v1091, %v1133
      %vm1140 = vcmp.eq.f32.partialorder %v1092, %v1136
      %v1141 = vsel %vm1137, %v502, 3e+38
      %v1142 = vsel %vm1138, %v502, 3e+38
      %v1143 = vsel %vm1139, %v502, 3e+38
      %v1144 = vsel %vm1140, %v502, 3e+38
      %v1145 = vsel %vm544, %v1141, inf
      %1146 = vmin.xlane.f32.xlu0 %v1145
      %v1147 = vpop.xlane.xlu0 %1146
      %v1148 = vsel %vm544, %v1142, inf
      %1149 = vmin.xlane.f32.xlu0 %v1148
      %v1150 = vpop.xlane.xlu0 %1149
      %v1151 = vsel %vm544, %v1143, inf
      %1152 = vmin.xlane.f32.xlu0 %v1151
      %v1153 = vpop.xlane.xlu0 %1152
      %v1154 = vsel %vm544, %v1144, inf
      %1155 = vmin.xlane.f32.xlu0 %v1154
      %v1156 = vpop.xlane.xlu0 %1155
      %vm1157 = vcmp.eq.f32.partialorder %v502, %v1147
      %vm1158 = vcmp.eq.f32.partialorder %v502, %v1150
      %vm1159 = vcmp.eq.f32.partialorder %v502, %v1153
      %vm1160 = vcmp.eq.f32.partialorder %v502, %v1156
      %v1161 = vsel %vm1157, %v507, 3e+38
      %v1162 = vsel %vm1158, %v508, 3e+38
      %v1163 = vsel %vm1159, %v509, 3e+38
      %v1164 = vsel %vm1160, %v510, 3e+38
      %v1165 = vsel %vm544, %v1161, inf
      %1166 = vmin.xlane.f32.xlu0 %v1165
      %v1167 = vpop.xlane.xlu0 %1166
      %v1168 = vsel %vm544, %v1162, inf
      %1169 = vmin.xlane.f32.xlu0 %v1168
      %v1170 = vpop.xlane.xlu0 %1169
      %v1171 = vsel %vm544, %v1163, inf
      %1172 = vmin.xlane.f32.xlu0 %v1171
      %v1173 = vpop.xlane.xlu0 %1172
      %v1174 = vsel %vm544, %v1164, inf
      %1175 = vmin.xlane.f32.xlu0 %v1174
      %v1176 = vpop.xlane.xlu0 %1175
      %vm1177 = vcmp.lt.f32.partialorder %v1095, %v1127
      %vm1178 = vcmp.lt.f32.partialorder %v1098, %v1130
      %vm1179 = vcmp.lt.f32.partialorder %v1101, %v1133
      %vm1180 = vcmp.lt.f32.partialorder %v1104, %v1136
      %v1181 = vsel %vm1177, %v1095, %v1127
      %v1182 = vsel %vm1178, %v1098, %v1130
      %v1183 = vsel %vm1179, %v1101, %v1133
      %v1184 = vsel %vm1180, %v1104, %v1136
      %v1185 = vsel %vm1177, %v1115, %v1167
      %v1186 = vsel %vm1178, %v1118, %v1170
      %v1187 = vsel %vm1179, %v1121, %v1173
      %v1188 = vsel %vm1180, %v1124, %v1176
      %vm1189 = vcmp.eq.f32.partialorder %v502, 4.0
      %v1190 = vsel %vm1189, %v1181, %v1045
      %v1191 = vsel %vm1189, %v1182, %v1046
      %v1192 = vsel %vm1189, %v1183, %v1047
      %v1193 = vsel %vm1189, %v1184, %v1048
      %v1194 = vsel %vm1189, %v1185, %v1049
      %v1195 = vsel %vm1189, %v1186, %v1050
      %v1196 = vsel %vm1189, %v1187, %v1051
      %v1197 = vsel %vm1189, %v1188, %v1052
      %vm1198 = vcmp.eq.f32.partialorder %v501, %v1115
      %vm1199 = vcmp.eq.f32.partialorder %v501, %v1118
      %vm1200 = vcmp.eq.f32.partialorder %v501, %v1121
      %vm1201 = vcmp.eq.f32.partialorder %v501, %v1124
      %v1202 = vsel %vm1177, 1, 0
      %v1203 = vsel %vm1178, 1, 0
      %v1204 = vsel %vm1179, 1, 0
      %v1205 = vsel %vm1180, 1, 0
      %vm1206 = vcmp.eq.s32.totalorder %v1202, 1
      %vm1207 = vcmp.eq.s32.totalorder %v1203, 1
      %vm1208 = vcmp.eq.s32.totalorder %v1204, 1
      %vm1209 = vcmp.eq.s32.totalorder %v1205, 1
      %vm1210 = vmand %vm1206, %vm1198
      %vm1211 = vmand %vm1207, %vm1199
      %vm1212 = vmand %vm1208, %vm1200
      %vm1213 = vmand %vm1209, %vm1201
      %v1214 = vsel %vm1210, inf, %v1069
      %v1215 = vsel %vm1211, inf, %v1070
      %v1216 = vsel %vm1212, inf, %v1071
      %v1217 = vsel %vm1213, inf, %v1072
      %vm1218 = vmxor %vm1177, 1
      %vm1219 = vmxor %vm1178, 1
      %vm1220 = vmxor %vm1179, 1
      %vm1221 = vmxor %vm1180, 1
      %v1222 = vsel %vm1218, 1, 0
      %v1223 = vsel %vm1219, 1, 0
      %v1224 = vsel %vm1220, 1, 0
      %v1225 = vsel %vm1221, 1, 0
      %vm1226 = vcmp.eq.s32.totalorder %v1222, 1
      %vm1227 = vcmp.eq.s32.totalorder %v1223, 1
      %vm1228 = vcmp.eq.s32.totalorder %v1224, 1
      %vm1229 = vcmp.eq.s32.totalorder %v1225, 1
      %vm1230 = vmand %vm1226, %vm1157
      %vm1231 = vmand %vm1227, %vm1158
      %vm1232 = vmand %vm1228, %vm1159
      %vm1233 = vmand %vm1229, %vm1160
      %v1234 = vsel %vm1230, inf, %v1089
      %v1235 = vsel %vm1231, inf, %v1090
      %v1236 = vsel %vm1232, inf, %v1091
      %v1237 = vsel %vm1233, inf, %v1092
      %v1238 = vsel %vm511, %v1214, inf
      %1239 = vmin.xlane.f32.xlu0 %v1238
      %v1240 = vpop.xlane.xlu0 %1239
      %v1241 = vsel %vm511, %v1215, inf
      %1242 = vmin.xlane.f32.xlu0 %v1241
      %v1243 = vpop.xlane.xlu0 %1242
      %v1244 = vsel %vm511, %v1216, inf
      %1245 = vmin.xlane.f32.xlu0 %v1244
      %v1246 = vpop.xlane.xlu0 %1245
      %v1247 = vsel %vm511, %v1217, inf
      %1248 = vmin.xlane.f32.xlu0 %v1247
      %v1249 = vpop.xlane.xlu0 %1248
      %vm1250 = vcmp.eq.f32.partialorder %v1214, %v1240
      %vm1251 = vcmp.eq.f32.partialorder %v1215, %v1243
      %vm1252 = vcmp.eq.f32.partialorder %v1216, %v1246
      %vm1253 = vcmp.eq.f32.partialorder %v1217, %v1249
      %v1254 = vsel %vm1250, %v501, 3e+38
      %v1255 = vsel %vm1251, %v501, 3e+38
      %v1256 = vsel %vm1252, %v501, 3e+38
      %v1257 = vsel %vm1253, %v501, 3e+38
      %v1258 = vsel %vm511, %v1254, inf
      %1259 = vmin.xlane.f32.xlu0 %v1258
      %v1260 = vpop.xlane.xlu0 %1259
      %v1261 = vsel %vm511, %v1255, inf
      %1262 = vmin.xlane.f32.xlu0 %v1261
      %v1263 = vpop.xlane.xlu0 %1262
      %v1264 = vsel %vm511, %v1256, inf
      %1265 = vmin.xlane.f32.xlu0 %v1264
      %v1266 = vpop.xlane.xlu0 %1265
      %v1267 = vsel %vm511, %v1257, inf
      %1268 = vmin.xlane.f32.xlu0 %v1267
      %v1269 = vpop.xlane.xlu0 %1268
      %v1270 = vsel %vm544, %v1234, inf
      %1271 = vmin.xlane.f32.xlu0 %v1270
      %v1272 = vpop.xlane.xlu0 %1271
      %v1273 = vsel %vm544, %v1235, inf
      %1274 = vmin.xlane.f32.xlu0 %v1273
      %v1275 = vpop.xlane.xlu0 %1274
      %v1276 = vsel %vm544, %v1236, inf
      %1277 = vmin.xlane.f32.xlu0 %v1276
      %v1278 = vpop.xlane.xlu0 %1277
      %v1279 = vsel %vm544, %v1237, inf
      %1280 = vmin.xlane.f32.xlu0 %v1279
      %v1281 = vpop.xlane.xlu0 %1280
      %vm1282 = vcmp.eq.f32.partialorder %v1234, %v1272
      %vm1283 = vcmp.eq.f32.partialorder %v1235, %v1275
      %vm1284 = vcmp.eq.f32.partialorder %v1236, %v1278
      %vm1285 = vcmp.eq.f32.partialorder %v1237, %v1281
      %v1286 = vsel %vm1282, %v502, 3e+38
      %v1287 = vsel %vm1283, %v502, 3e+38
      %v1288 = vsel %vm1284, %v502, 3e+38
      %v1289 = vsel %vm1285, %v502, 3e+38
      %v1290 = vsel %vm544, %v1286, inf
      %1291 = vmin.xlane.f32.xlu0 %v1290
      %v1292 = vpop.xlane.xlu0 %1291
      %v1293 = vsel %vm544, %v1287, inf
      %1294 = vmin.xlane.f32.xlu0 %v1293
      %v1295 = vpop.xlane.xlu0 %1294
      %v1296 = vsel %vm544, %v1288, inf
      %1297 = vmin.xlane.f32.xlu0 %v1296
      %v1298 = vpop.xlane.xlu0 %1297
      %v1299 = vsel %vm544, %v1289, inf
      %1300 = vmin.xlane.f32.xlu0 %v1299
      %v1301 = vpop.xlane.xlu0 %1300
      %vm1302 = vcmp.eq.f32.partialorder %v502, %v1292
      %vm1303 = vcmp.eq.f32.partialorder %v502, %v1295
      %vm1304 = vcmp.eq.f32.partialorder %v502, %v1298
      %vm1305 = vcmp.eq.f32.partialorder %v502, %v1301
      %v1306 = vsel %vm1302, %v507, 3e+38
      %v1307 = vsel %vm1303, %v508, 3e+38
      %v1308 = vsel %vm1304, %v509, 3e+38
      %v1309 = vsel %vm1305, %v510, 3e+38
      %v1310 = vsel %vm544, %v1306, inf
      %1311 = vmin.xlane.f32.xlu0 %v1310
      %v1312 = vpop.xlane.xlu0 %1311
      %v1313 = vsel %vm544, %v1307, inf
      %1314 = vmin.xlane.f32.xlu0 %v1313
      %v1315 = vpop.xlane.xlu0 %1314
      %v1316 = vsel %vm544, %v1308, inf
      %1317 = vmin.xlane.f32.xlu0 %v1316
      %v1318 = vpop.xlane.xlu0 %1317
      %v1319 = vsel %vm544, %v1309, inf
      %1320 = vmin.xlane.f32.xlu0 %v1319
      %v1321 = vpop.xlane.xlu0 %1320
      %vm1322 = vcmp.lt.f32.partialorder %v1240, %v1272
      %vm1323 = vcmp.lt.f32.partialorder %v1243, %v1275
      %vm1324 = vcmp.lt.f32.partialorder %v1246, %v1278
      %vm1325 = vcmp.lt.f32.partialorder %v1249, %v1281
      %v1326 = vsel %vm1322, %v1240, %v1272
      %v1327 = vsel %vm1323, %v1243, %v1275
      %v1328 = vsel %vm1324, %v1246, %v1278
      %v1329 = vsel %vm1325, %v1249, %v1281
      %v1330 = vsel %vm1322, %v1260, %v1312
      %v1331 = vsel %vm1323, %v1263, %v1315
      %v1332 = vsel %vm1324, %v1266, %v1318
      %v1333 = vsel %vm1325, %v1269, %v1321
      %vm1334 = vcmp.eq.f32.partialorder %v502, 5.0
      %v1335 = vsel %vm1334, %v1326, %v1190
      %v1336 = vsel %vm1334, %v1327, %v1191
      %v1337 = vsel %vm1334, %v1328, %v1192
      %v1338 = vsel %vm1334, %v1329, %v1193
      %v1339 = vsel %vm1334, %v1330, %v1194
      %v1340 = vsel %vm1334, %v1331, %v1195
      %v1341 = vsel %vm1334, %v1332, %v1196
      %v1342 = vsel %vm1334, %v1333, %v1197
      %vm1343 = vcmp.eq.f32.partialorder %v501, %v1260
      %vm1344 = vcmp.eq.f32.partialorder %v501, %v1263
      %vm1345 = vcmp.eq.f32.partialorder %v501, %v1266
      %vm1346 = vcmp.eq.f32.partialorder %v501, %v1269
      %v1347 = vsel %vm1322, 1, 0
      %v1348 = vsel %vm1323, 1, 0
      %v1349 = vsel %vm1324, 1, 0
      %v1350 = vsel %vm1325, 1, 0
      %vm1351 = vcmp.eq.s32.totalorder %v1347, 1
      %vm1352 = vcmp.eq.s32.totalorder %v1348, 1
      %vm1353 = vcmp.eq.s32.totalorder %v1349, 1
      %vm1354 = vcmp.eq.s32.totalorder %v1350, 1
      %vm1355 = vmand %vm1351, %vm1343
      %vm1356 = vmand %vm1352, %vm1344
      %vm1357 = vmand %vm1353, %vm1345
      %vm1358 = vmand %vm1354, %vm1346
      %v1359 = vsel %vm1355, inf, %v1214
      %v1360 = vsel %vm1356, inf, %v1215
      %v1361 = vsel %vm1357, inf, %v1216
      %v1362 = vsel %vm1358, inf, %v1217
      %vm1363 = vmxor %vm1322, 1
      %vm1364 = vmxor %vm1323, 1
      %vm1365 = vmxor %vm1324, 1
      %vm1366 = vmxor %vm1325, 1
      %v1367 = vsel %vm1363, 1, 0
      %v1368 = vsel %vm1364, 1, 0
      %v1369 = vsel %vm1365, 1, 0
      %v1370 = vsel %vm1366, 1, 0
      %vm1371 = vcmp.eq.s32.totalorder %v1367, 1
      %vm1372 = vcmp.eq.s32.totalorder %v1368, 1
      %vm1373 = vcmp.eq.s32.totalorder %v1369, 1
      %vm1374 = vcmp.eq.s32.totalorder %v1370, 1
      %vm1375 = vmand %vm1371, %vm1302
      %vm1376 = vmand %vm1372, %vm1303
      %vm1377 = vmand %vm1373, %vm1304
      %vm1378 = vmand %vm1374, %vm1305
      %v1379 = vsel %vm1375, inf, %v1234
      %v1380 = vsel %vm1376, inf, %v1235
      %v1381 = vsel %vm1377, inf, %v1236
      %v1382 = vsel %vm1378, inf, %v1237
      %v1383 = vsel %vm511, %v1359, inf
      %1384 = vmin.xlane.f32.xlu0 %v1383
      %v1385 = vpop.xlane.xlu0 %1384
      %v1386 = vsel %vm511, %v1360, inf
      %1387 = vmin.xlane.f32.xlu0 %v1386
      %v1388 = vpop.xlane.xlu0 %1387
      %v1389 = vsel %vm511, %v1361, inf
      %1390 = vmin.xlane.f32.xlu0 %v1389
      %v1391 = vpop.xlane.xlu0 %1390
      %v1392 = vsel %vm511, %v1362, inf
      %1393 = vmin.xlane.f32.xlu0 %v1392
      %v1394 = vpop.xlane.xlu0 %1393
      %vm1395 = vcmp.eq.f32.partialorder %v1359, %v1385
      %vm1396 = vcmp.eq.f32.partialorder %v1360, %v1388
      %vm1397 = vcmp.eq.f32.partialorder %v1361, %v1391
      %vm1398 = vcmp.eq.f32.partialorder %v1362, %v1394
      %v1399 = vsel %vm1395, %v501, 3e+38
      %v1400 = vsel %vm1396, %v501, 3e+38
      %v1401 = vsel %vm1397, %v501, 3e+38
      %v1402 = vsel %vm1398, %v501, 3e+38
      %v1403 = vsel %vm511, %v1399, inf
      %1404 = vmin.xlane.f32.xlu0 %v1403
      %v1405 = vpop.xlane.xlu0 %1404
      %v1406 = vsel %vm511, %v1400, inf
      %1407 = vmin.xlane.f32.xlu0 %v1406
      %v1408 = vpop.xlane.xlu0 %1407
      %v1409 = vsel %vm511, %v1401, inf
      %1410 = vmin.xlane.f32.xlu0 %v1409
      %v1411 = vpop.xlane.xlu0 %1410
      %v1412 = vsel %vm511, %v1402, inf
      %1413 = vmin.xlane.f32.xlu0 %v1412
      %v1414 = vpop.xlane.xlu0 %1413
      %v1415 = vsel %vm544, %v1379, inf
      %1416 = vmin.xlane.f32.xlu0 %v1415
      %v1417 = vpop.xlane.xlu0 %1416
      %v1418 = vsel %vm544, %v1380, inf
      %1419 = vmin.xlane.f32.xlu0 %v1418
      %v1420 = vpop.xlane.xlu0 %1419
      %v1421 = vsel %vm544, %v1381, inf
      %1422 = vmin.xlane.f32.xlu0 %v1421
      %v1423 = vpop.xlane.xlu0 %1422
      %v1424 = vsel %vm544, %v1382, inf
      %1425 = vmin.xlane.f32.xlu0 %v1424
      %v1426 = vpop.xlane.xlu0 %1425
      %vm1427 = vcmp.eq.f32.partialorder %v1379, %v1417
      %vm1428 = vcmp.eq.f32.partialorder %v1380, %v1420
      %vm1429 = vcmp.eq.f32.partialorder %v1381, %v1423
      %vm1430 = vcmp.eq.f32.partialorder %v1382, %v1426
      %v1431 = vsel %vm1427, %v502, 3e+38
      %v1432 = vsel %vm1428, %v502, 3e+38
      %v1433 = vsel %vm1429, %v502, 3e+38
      %v1434 = vsel %vm1430, %v502, 3e+38
      %v1435 = vsel %vm544, %v1431, inf
      %1436 = vmin.xlane.f32.xlu0 %v1435
      %v1437 = vpop.xlane.xlu0 %1436
      %v1438 = vsel %vm544, %v1432, inf
      %1439 = vmin.xlane.f32.xlu0 %v1438
      %v1440 = vpop.xlane.xlu0 %1439
      %v1441 = vsel %vm544, %v1433, inf
      %1442 = vmin.xlane.f32.xlu0 %v1441
      %v1443 = vpop.xlane.xlu0 %1442
      %v1444 = vsel %vm544, %v1434, inf
      %1445 = vmin.xlane.f32.xlu0 %v1444
      %v1446 = vpop.xlane.xlu0 %1445
      %vm1447 = vcmp.eq.f32.partialorder %v502, %v1437
      %vm1448 = vcmp.eq.f32.partialorder %v502, %v1440
      %vm1449 = vcmp.eq.f32.partialorder %v502, %v1443
      %vm1450 = vcmp.eq.f32.partialorder %v502, %v1446
      %v1451 = vsel %vm1447, %v507, 3e+38
      %v1452 = vsel %vm1448, %v508, 3e+38
      %v1453 = vsel %vm1449, %v509, 3e+38
      %v1454 = vsel %vm1450, %v510, 3e+38
      %v1455 = vsel %vm544, %v1451, inf
      %1456 = vmin.xlane.f32.xlu0 %v1455
      %v1457 = vpop.xlane.xlu0 %1456
      %v1458 = vsel %vm544, %v1452, inf
      %1459 = vmin.xlane.f32.xlu0 %v1458
      %v1460 = vpop.xlane.xlu0 %1459
      %v1461 = vsel %vm544, %v1453, inf
      %1462 = vmin.xlane.f32.xlu0 %v1461
      %v1463 = vpop.xlane.xlu0 %1462
      %v1464 = vsel %vm544, %v1454, inf
      %1465 = vmin.xlane.f32.xlu0 %v1464
      %v1466 = vpop.xlane.xlu0 %1465
      %vm1467 = vcmp.lt.f32.partialorder %v1385, %v1417
      %vm1468 = vcmp.lt.f32.partialorder %v1388, %v1420
      %vm1469 = vcmp.lt.f32.partialorder %v1391, %v1423
      %vm1470 = vcmp.lt.f32.partialorder %v1394, %v1426
      %v1471 = vsel %vm1467, %v1385, %v1417
      %v1472 = vsel %vm1468, %v1388, %v1420
      %v1473 = vsel %vm1469, %v1391, %v1423
      %v1474 = vsel %vm1470, %v1394, %v1426
      %v1475 = vsel %vm1467, %v1405, %v1457
      %v1476 = vsel %vm1468, %v1408, %v1460
      %v1477 = vsel %vm1469, %v1411, %v1463
      %v1478 = vsel %vm1470, %v1414, %v1466
      %vm1479 = vcmp.eq.f32.partialorder %v502, 6.0
      %v1480 = vsel %vm1479, %v1471, %v1335
      %v1481 = vsel %vm1479, %v1472, %v1336
      %v1482 = vsel %vm1479, %v1473, %v1337
      %v1483 = vsel %vm1479, %v1474, %v1338
      %v1484 = vsel %vm1479, %v1475, %v1339
      %v1485 = vsel %vm1479, %v1476, %v1340
      %v1486 = vsel %vm1479, %v1477, %v1341
      %v1487 = vsel %vm1479, %v1478, %v1342
      %vm1488 = vcmp.eq.f32.partialorder %v501, %v1405
      %vm1489 = vcmp.eq.f32.partialorder %v501, %v1408
      %vm1490 = vcmp.eq.f32.partialorder %v501, %v1411
      %vm1491 = vcmp.eq.f32.partialorder %v501, %v1414
      %v1492 = vsel %vm1467, 1, 0
      %v1493 = vsel %vm1468, 1, 0
      %v1494 = vsel %vm1469, 1, 0
      %v1495 = vsel %vm1470, 1, 0
      %vm1496 = vcmp.eq.s32.totalorder %v1492, 1
      %vm1497 = vcmp.eq.s32.totalorder %v1493, 1
      %vm1498 = vcmp.eq.s32.totalorder %v1494, 1
      %vm1499 = vcmp.eq.s32.totalorder %v1495, 1
      %vm1500 = vmand %vm1496, %vm1488
      %vm1501 = vmand %vm1497, %vm1489
      %vm1502 = vmand %vm1498, %vm1490
      %vm1503 = vmand %vm1499, %vm1491
      %v1504 = vsel %vm1500, inf, %v1359
      %v1505 = vsel %vm1501, inf, %v1360
      %v1506 = vsel %vm1502, inf, %v1361
      %v1507 = vsel %vm1503, inf, %v1362
      %vm1508 = vmxor %vm1467, 1
      %vm1509 = vmxor %vm1468, 1
      %vm1510 = vmxor %vm1469, 1
      %vm1511 = vmxor %vm1470, 1
      %v1512 = vsel %vm1508, 1, 0
      %v1513 = vsel %vm1509, 1, 0
      %v1514 = vsel %vm1510, 1, 0
      %v1515 = vsel %vm1511, 1, 0
      %vm1516 = vcmp.eq.s32.totalorder %v1512, 1
      %vm1517 = vcmp.eq.s32.totalorder %v1513, 1
      %vm1518 = vcmp.eq.s32.totalorder %v1514, 1
      %vm1519 = vcmp.eq.s32.totalorder %v1515, 1
      %vm1520 = vmand %vm1516, %vm1447
      %vm1521 = vmand %vm1517, %vm1448
      %vm1522 = vmand %vm1518, %vm1449
      %vm1523 = vmand %vm1519, %vm1450
      %v1524 = vsel %vm1520, inf, %v1379
      %v1525 = vsel %vm1521, inf, %v1380
      %v1526 = vsel %vm1522, inf, %v1381
      %v1527 = vsel %vm1523, inf, %v1382
      %v1528 = vsel %vm511, %v1504, inf
      %1529 = vmin.xlane.f32.xlu0 %v1528
      %v1530 = vpop.xlane.xlu0 %1529
      %v1531 = vsel %vm511, %v1505, inf
      %1532 = vmin.xlane.f32.xlu0 %v1531
      %v1533 = vpop.xlane.xlu0 %1532
      %v1534 = vsel %vm511, %v1506, inf
      %1535 = vmin.xlane.f32.xlu0 %v1534
      %v1536 = vpop.xlane.xlu0 %1535
      %v1537 = vsel %vm511, %v1507, inf
      %1538 = vmin.xlane.f32.xlu0 %v1537
      %v1539 = vpop.xlane.xlu0 %1538
      %vm1540 = vcmp.eq.f32.partialorder %v1504, %v1530
      %vm1541 = vcmp.eq.f32.partialorder %v1505, %v1533
      %vm1542 = vcmp.eq.f32.partialorder %v1506, %v1536
      %vm1543 = vcmp.eq.f32.partialorder %v1507, %v1539
      %v1544 = vsel %vm1540, %v501, 3e+38
      %v1545 = vsel %vm1541, %v501, 3e+38
      %v1546 = vsel %vm1542, %v501, 3e+38
      %v1547 = vsel %vm1543, %v501, 3e+38
      %v1548 = vsel %vm511, %v1544, inf
      %1549 = vmin.xlane.f32.xlu0 %v1548
      %v1550 = vpop.xlane.xlu0 %1549
      %v1551 = vsel %vm511, %v1545, inf
      %1552 = vmin.xlane.f32.xlu0 %v1551
      %v1553 = vpop.xlane.xlu0 %1552
      %v1554 = vsel %vm511, %v1546, inf
      %1555 = vmin.xlane.f32.xlu0 %v1554
      %v1556 = vpop.xlane.xlu0 %1555
      %v1557 = vsel %vm511, %v1547, inf
      %1558 = vmin.xlane.f32.xlu0 %v1557
      %v1559 = vpop.xlane.xlu0 %1558
      %v1560 = vsel %vm544, %v1524, inf
      %1561 = vmin.xlane.f32.xlu0 %v1560
      %v1562 = vpop.xlane.xlu0 %1561
      %v1563 = vsel %vm544, %v1525, inf
      %1564 = vmin.xlane.f32.xlu0 %v1563
      %v1565 = vpop.xlane.xlu0 %1564
      %v1566 = vsel %vm544, %v1526, inf
      %1567 = vmin.xlane.f32.xlu0 %v1566
      %v1568 = vpop.xlane.xlu0 %1567
      %v1569 = vsel %vm544, %v1527, inf
      %1570 = vmin.xlane.f32.xlu0 %v1569
      %v1571 = vpop.xlane.xlu0 %1570
      %vm1572 = vcmp.eq.f32.partialorder %v1524, %v1562
      %vm1573 = vcmp.eq.f32.partialorder %v1525, %v1565
      %vm1574 = vcmp.eq.f32.partialorder %v1526, %v1568
      %vm1575 = vcmp.eq.f32.partialorder %v1527, %v1571
      %v1576 = vsel %vm1572, %v502, 3e+38
      %v1577 = vsel %vm1573, %v502, 3e+38
      %v1578 = vsel %vm1574, %v502, 3e+38
      %v1579 = vsel %vm1575, %v502, 3e+38
      %v1580 = vsel %vm544, %v1576, inf
      %1581 = vmin.xlane.f32.xlu0 %v1580
      %v1582 = vpop.xlane.xlu0 %1581
      %v1583 = vsel %vm544, %v1577, inf
      %1584 = vmin.xlane.f32.xlu0 %v1583
      %v1585 = vpop.xlane.xlu0 %1584
      %v1586 = vsel %vm544, %v1578, inf
      %1587 = vmin.xlane.f32.xlu0 %v1586
      %v1588 = vpop.xlane.xlu0 %1587
      %v1589 = vsel %vm544, %v1579, inf
      %1590 = vmin.xlane.f32.xlu0 %v1589
      %v1591 = vpop.xlane.xlu0 %1590
      %vm1592 = vcmp.eq.f32.partialorder %v502, %v1582
      %vm1593 = vcmp.eq.f32.partialorder %v502, %v1585
      %vm1594 = vcmp.eq.f32.partialorder %v502, %v1588
      %vm1595 = vcmp.eq.f32.partialorder %v502, %v1591
      %v1596 = vsel %vm1592, %v507, 3e+38
      %v1597 = vsel %vm1593, %v508, 3e+38
      %v1598 = vsel %vm1594, %v509, 3e+38
      %v1599 = vsel %vm1595, %v510, 3e+38
      %v1600 = vsel %vm544, %v1596, inf
      %1601 = vmin.xlane.f32.xlu0 %v1600
      %v1602 = vpop.xlane.xlu0 %1601
      %v1603 = vsel %vm544, %v1597, inf
      %1604 = vmin.xlane.f32.xlu0 %v1603
      %v1605 = vpop.xlane.xlu0 %1604
      %v1606 = vsel %vm544, %v1598, inf
      %1607 = vmin.xlane.f32.xlu0 %v1606
      %v1608 = vpop.xlane.xlu0 %1607
      %v1609 = vsel %vm544, %v1599, inf
      %1610 = vmin.xlane.f32.xlu0 %v1609
      %v1611 = vpop.xlane.xlu0 %1610
      %vm1612 = vcmp.lt.f32.partialorder %v1530, %v1562
      %vm1613 = vcmp.lt.f32.partialorder %v1533, %v1565
      %vm1614 = vcmp.lt.f32.partialorder %v1536, %v1568
      %vm1615 = vcmp.lt.f32.partialorder %v1539, %v1571
      %v1616 = vsel %vm1612, %v1530, %v1562
      %v1617 = vsel %vm1613, %v1533, %v1565
      %v1618 = vsel %vm1614, %v1536, %v1568
      %v1619 = vsel %vm1615, %v1539, %v1571
      %v1620 = vsel %vm1612, %v1550, %v1602
      %v1621 = vsel %vm1613, %v1553, %v1605
      %v1622 = vsel %vm1614, %v1556, %v1608
      %v1623 = vsel %vm1615, %v1559, %v1611
      %vm1624 = vcmp.eq.f32.partialorder %v502, 7.0
      %v1625 = vsel %vm1624, %v1616, %v1480
      %v1626 = vsel %vm1624, %v1617, %v1481
      %v1627 = vsel %vm1624, %v1618, %v1482
      %v1628 = vsel %vm1624, %v1619, %v1483
      %v1629 = vsel %vm1624, %v1620, %v1484
      %v1630 = vsel %vm1624, %v1621, %v1485
      %v1631 = vsel %vm1624, %v1622, %v1486
      %v1632 = vsel %vm1624, %v1623, %v1487
      %1633 = vst.msk [vmem:[#allocation2] sm:$0xff] %vm544, %v1625
      %1634 = vst.msk [vmem:[#allocation2 + $0x8] sm:$0xff] %vm544, %v1626
      %1635 = vst.msk [vmem:[#allocation2 + $0x10] sm:$0xff] %vm544, %v1627
      %1636 = vst.msk [vmem:[#allocation2 + $0x18] sm:$0xff] %vm544, %v1628
      %1637 = vst.msk [vmem:[#allocation3] sm:$0xff] %vm544, %v1629
      %1638 = vst.msk [vmem:[#allocation3 + $0x8] sm:$0xff] %vm544, %v1630
      %1639 = vst.msk [vmem:[#allocation3 + $0x10] sm:$0xff] %vm544, %v1631
      %1640 = vst.msk [vmem:[#allocation3 + $0x18] sm:$0xff] %vm544, %v1632
      // Predicated region
      $region41: #{tpu_custom_call.1} parent=35 // pred_check
        %p1641 = pneg %p333
      $region42: #{tpu_custom_call.1} parent=35 // pred_check_branch
        %1643 = sbr.rel (%p1641) target = $region44
      $region43: #{tpu_custom_call.1} parent=35 // pred_region
        %v1644 = vld [vmem:[#allocation3] sm:$0xff]
        %v1645 = vld [vmem:[#allocation3 + $0x8] sm:$0xff]
        %v1646 = vld [vmem:[#allocation3 + $0x10] sm:$0xff]
        %v1647 = vld [vmem:[#allocation3 + $0x18] sm:$0xff]
        %v1648 = vcvt.f32.s32.to.zero.pseudo %v1644
        %v1649 = vcvt.f32.s32.to.zero.pseudo %v1645
        %v1650 = vcvt.f32.s32.to.zero.pseudo %v1646
        %v1651 = vcvt.f32.s32.to.zero.pseudo %v1647
        %1652 = vst.msk [vmem:[%s331] sm:$0xff] %vm544, %v1648
        %1653 = vst.msk [vmem:[%s331 + $0x8] sm:$0xff] %vm544, %v1649
        %1654 = vst.msk [vmem:[%s331 + $0x10] sm:$0xff] %vm544, %v1650
        %1655 = vst.msk [vmem:[%s331 + $0x18] sm:$0xff] %vm544, %v1651
      $region44: #{tpu_custom_call.1} parent=35 // pred_fallthru
        _
      %s1656 = smul.u32 4, %s21
      %p1657 = scmp.lt.s32.totalorder %s20, 1
      %s1658 = scalar_select %p1657, %s20, 1
      %p1659 = scmp.lt.s32.totalorder %s1656, 3
      %s1660 = scalar_select %p1659, %s1656, 3
      %s1661 = smul.addr %s1658, 4
      %s1662 = sadd.s32 %s1660, %s1661
      %s1663 = smul.addr %s1662, 8
      %s1664 = scalar_lea.vmem %s4, %s1663
      // Predicated region
      $region45: #{tpu_custom_call.1} parent=35 // pred_check
        %p1665 = pneg %p166
      $region46: #{tpu_custom_call.1} parent=35 // pred_check_branch
        %1667 = sbr.rel (%p1665) target = $region48
      $region47: #{tpu_custom_call.1} parent=35 // pred_region
        %s1668 = smul.u32 4, %s21
      $region48: #{tpu_custom_call.1} parent=35 // pred_fallthru
        _
    $region36: #{tpu_custom_call.1} parent=5 // pred_fallthru
      _
    %p1669 = scmp.le.s32.totalorder 2, %s10
    // Predicated region
    $region49: #{tpu_custom_call.1} parent=5 // pred_check
      %p1670 = pneg %p1669
    $region50: #{tpu_custom_call.1} parent=5 // pred_check_branch
      %1672 = sbr.rel (%p1670) target = $region52
    $region51: #{tpu_custom_call.1} parent=5 // pred_region
      %s1673 = ssub.s32 %s10, 2
      // Predicated region
      $region53: #{tpu_custom_call.1} parent=51 // pred_check
        %p1674 = pneg %p172
      $region54: #{tpu_custom_call.1} parent=51 // pred_check_branch
        %1676 = sbr.rel (%p1674) target = $region56
      $region55: #{tpu_custom_call.1} parent=51 // pred_region
        %s1677 = smul.u32 4, %s24
        %p1678 = scmp.lt.s32.totalorder %s23, 1
        %s1679 = scalar_select %p1678, %s23, 1
        %p1680 = scmp.lt.s32.totalorder %s1677, 3
        %s1681 = scalar_select %p1680, %s1677, 3
        %s1682 = smul.addr %s1679, 4
        %s1683 = sadd.s32 %s1681, %s1682
        %s1684 = smul.addr %s1683, 8
        %s1685 = scalar_lea.vmem %s4, %s1684
      $region56: #{tpu_custom_call.1} parent=51 // pred_fallthru
        _
    $region52: #{tpu_custom_call.1} parent=5 // pred_fallthru
      _
  $region6: #{tpu_custom_call.1} parent=0 // loop_footer
    %s14 = sadd.s32 1, %s10
  $region7: #{tpu_custom_call.1} parent=0 // loop_footer_branch
    %9 = sbr.rel target = $region3
  $region8: #{tpu_custom_call.1} parent=0 // loop_exit
    _

</llo_original>
